<compile_context>
chip_gen: v7x
topology: tpu7x:2x2x1
jax: 0.10.0
libtpu: 0.0.40
codegen_flags: <defaults>
</compile_context>

<pallas_src>
import math

import jax
import jax.numpy as jnp
import numpy as np
from jax.experimental import pallas as pl
from jax.experimental.pallas import tpu as pltpu

ACTIVATE_FUN = "relu"   # opt.activate_fun in {'relu', 'gelu'}; relu chosen as default config
FUSE_TYPE = "att"       # opt.fuse_type


def _activate(x):
    if ACTIVATE_FUN == "relu":
        return jnp.maximum(x, 0.0)
    # gelu exactly as the reference: x * 0.5 * (1 + erf(x / sqrt(2)))
    return x * 0.5 * (1.0 + jax.lax.erf(x / math.sqrt(2.0)))


# ---------------------------------------------------------------------------
# Single fused kernel:  text_change  ->  'att' fusion (no materialized concat)
# ---------------------------------------------------------------------------
def _fused_att_kernel(text_ref, img_ref, bias_ref,
                      wt_ref, bt_ref, w1_ref, b1_ref, w2_ref,
                      out_ref, tinit_ref):
    TB, Lt, Dt = text_ref.shape
    _, Li, Dm = img_ref.shape
    Dh = w1_ref.shape[1]
    f32 = jnp.float32

    # 1) text_change: Linear(Dt -> Dm) + activation; batch rows collapsed into M.
    #    bf16 MXU inputs, f32 accumulation, activation in f32.
    x2d = text_ref[...].reshape(TB * Lt, Dt)
    t2d = _activate(jnp.dot(x2d, wt_ref[...], preferred_element_type=f32)
                    + bt_ref[...].astype(f32))
    t3 = t2d.reshape(TB, Lt, Dm)
    tinit_ref[...] = t3.astype(tinit_ref.dtype)          # text_init module output

    # 2) attention hidden: Linear(Dm -> Dh) + act; text and image halves share
    #    w_att1/b_att1 so the (TB, L, Dm) concat is never materialized.
    b1 = b1_ref[...].astype(f32)
    h_t = _activate(jnp.dot(t2d.astype(jnp.bfloat16), w1_ref[...],
                            preferred_element_type=f32) + b1)
    img2d = img_ref[...].reshape(TB * Li, Dm)
    h_i = _activate(jnp.dot(img2d, w1_ref[...], preferred_element_type=f32) + b1)

    # 3) Dh -> 1 score projection as a VPU multiply + cross-lane reduction.
    w2 = w2_ref[...].astype(f32)                          # (1, Dh)
    s_t = jnp.sum((h_t * w2).reshape(TB, Lt, Dh), axis=-1)   # (TB, Lt)
    s_i = jnp.sum((h_i * w2).reshape(TB, Li, Dh), axis=-1)   # (TB, Li)

    # 4) masked softmax over the sequence (lane axis). bias_ref carries b_att2 plus
    #    -1e9 at masked positions (lane-dense additive bias).
    s = jnp.concatenate([s_t, s_i], axis=-1) + bias_ref[...].reshape(TB, Lt + Li)
    s_max = jnp.max(s, axis=-1, keepdims=True)
    e = jnp.exp(s - s_max)
    alpha = e * pl.reciprocal(jnp.sum(e, axis=-1, keepdims=True), approx=True)

    # 5) weighted sum over the sequence: VPU broadcast-multiply + sublane reduce
    #    (avoids M=1 batched MXU matmuls over the sequence slab).
    alpha_t = alpha[:, :Lt]
    alpha_i = alpha[:, Lt:]
    out = (jnp.sum(alpha_t[:, :, None] * t3, axis=1)
           + jnp.sum(alpha_i[:, :, None] * img_ref[...].astype(f32), axis=1))
    out_ref[...] = out[:, None, :].astype(out_ref.dtype)  # (TB, 1, Dm) lane-dense store


# ---------------------------------------------------------------------------
# Wrapper / tiling helpers
# ---------------------------------------------------------------------------
def _pick_block_b(batch_total):
    # Largest batch tile <= 8 that divides the batch while leaving >= 2 grid steps,
    # so v7x's 2 TensorCores both get work and per-step VMEM stays bounded.
    if batch_total <= 1:
        return max(batch_total, 1)
    target = min(8, max(1, batch_total // 2))
    for tb in range(target, 0, -1):
        if batch_total % tb == 0:
            return tb
    return 1


def _vmem_limit_bytes():
    # Per-generation budget: ~3/4 of physical VMEM (v5e/v6e 128 MiB -> 96 MiB,
    # v7x 64 MiB -> 48 MiB). Fall back to a v7x-safe value if the query fails.
    default_cap = 64 * 1024 * 1024
    try:
        cap = int(getattr(pltpu.get_tpu_info(), "vmem_capacity_bytes", default_cap))
    except Exception:
        cap = default_cap
    return cap * 3 // 4


def _const_spec(shape, single_buffer):
    index_map = lambda i: (0,) * len(shape)
    if single_buffer:
        # Grid-invariant weights: fetched once, no need for double buffering.
        return pl.BlockSpec(shape, index_map, pipeline_mode=pl.Buffered(1))
    return pl.BlockSpec(shape, index_map)


def _fused_att_call(params, text_bf16, image_bf16, bias, single_buffer_weights):
    Btot, Lt, Dt = text_bf16.shape
    _, Li, Dm = image_bf16.shape
    L = Lt + Li
    Dh = params["w_att1"].shape[1]

    TB = _pick_block_b(Btot)
    grid = (Btot // TB,)

    wt = params["w_text"].astype(jnp.bfloat16)
    w1 = params["w_att1"].astype(jnp.bfloat16)
    bt = params["b_text"].astype(jnp.float32)
    b1 = params["b_att1"].astype(jnp.float32)
    w2_row = params["w_att2"].reshape(1, Dh).astype(jnp.float32)  # (Dh,1) -> row for VPU reduce

    out3, tinit = pl.pallas_call(
        _fused_att_kernel,
        out_shape=(
            jax.ShapeDtypeStruct((Btot, 1, Dm), jnp.float32),
            # TODO(synk): text_init emitted in bf16 to halve its HBM writeback; the
            # reference torch module emits f32.
            jax.ShapeDtypeStruct((Btot, Lt, Dm), jnp.bfloat16),
        ),
        grid=grid,
        in_specs=[
            pl.BlockSpec((TB, Lt, Dt), lambda i: (i, 0, 0)),
            pl.BlockSpec((TB, Li, Dm), lambda i: (i, 0, 0)),
            pl.BlockSpec((TB, 1, L), lambda i: (i, 0, 0)),
            # grid-invariant weights / biases (constant index_map)
            _const_spec((Dt, Dm), single_buffer_weights),
            _const_spec((1, Dm), single_buffer_weights),
            _const_spec((Dm, Dh), single_buffer_weights),
            _const_spec((1, Dh), single_buffer_weights),
            _const_spec((1, Dh), single_buffer_weights),
        ],
        out_specs=(
            pl.BlockSpec((TB, 1, Dm), lambda i: (i, 0, 0)),
            pl.BlockSpec((TB, Lt, Dm), lambda i: (i, 0, 0)),
        ),
        compiler_params=pltpu.CompilerParams(
            dimension_semantics=("parallel",),      # shards batch tiles over v7x's 2 TCs
            vmem_limit_bytes=_vmem_limit_bytes(),   # per-generation budget
        ),
    )(text_bf16, image_bf16, bias, wt, bt, w1, b1, w2_row)

    return out3.reshape(Btot, Dm), tinit


def _run_fused(params, text_bf16, image_bf16, bias):
    try:
        return _fused_att_call(params, text_bf16, image_bf16, bias, True)
    except Exception:
        # TODO(synk): pl.Buffered(1) single-buffering unsupported on this jax build;
        # fall back to default double-buffered weight specs.
        return _fused_att_call(params, text_bf16, image_bf16, bias, False)


def _make_bias(params, text_image_mask, L):
    # Reference mask permute/slice/permute == mask[:, :L]. Fold masked_fill(-1e9) and
    # the scalar second attention bias into one lane-dense additive bias, shaped
    # (B, 1, L) so the pallas block keeps full extents on the last two dims.
    mask = text_image_mask[:, :L]
    bias = (jnp.where(mask == 0, -1000000000.0, 0.0).astype(jnp.float32)
            + params["b_att2"][0, 0])
    return bias[:, None, :]


# ---------------------------------------------------------------------------
# FuseModel.forward semantics (fuse_type='att')
# ---------------------------------------------------------------------------
def fuse_att_forward(params, text_feats, image_feats, text_image_mask):
    """FuseModel.forward, fuse_type='att', on precomputed backbone features."""
    # TODO(synk): frozen pretrained BERT (TextModel) and ViT backbones are not
    # reimplementable here; their last_hidden_state is taken directly as input.
    B, Lt, _ = text_feats.shape
    _, Li, _ = image_feats.shape
    L = Lt + Li
    bias = _make_bias(params, text_image_mask, L)
    out, tinit = _run_fused(params, text_feats.astype(jnp.bfloat16),
                            image_feats.astype(jnp.bfloat16), bias)
    # TODO(synk): reference 'att' branch reads text_image_length defined only in the
    # 'ave' branch (an upstream bug); use the concatenated sequence length here.
    cap_length = np.array([L] * B)
    return out, image_feats, tinit, cap_length


def tensorboard_model_forward(params, texts, bert_attention_mask, images, text_image_mask,
                              texts_aug, bert_attention_mask_aug, images_aug,
                              text_image_mask_aug, label):
    # TODO(synk): TensorBoardModel.forward passes ModelParam objects into cl_model with a
    # signature that does not match FuseModel.forward in the reference; here the FuseModel
    # fusion is applied to both the origin and the augment parameter sets.
    del bert_attention_mask, bert_attention_mask_aug, label  # consumed only by frozen BERT / loss
    B, Lt, _ = texts.shape
    _, Li, _ = images.shape
    L = Lt + Li

    # Origin + augment stacked along batch -> ONE fused pallas_call (weights held once,
    # grid >= 2 for the megacore split).
    text_all = jnp.concatenate([texts, texts_aug], axis=0).astype(jnp.bfloat16)
    image_all = jnp.concatenate([images, images_aug], axis=0).astype(jnp.bfloat16)
    bias_all = jnp.concatenate([_make_bias(params, text_image_mask, L),
                                _make_bias(params, text_image_mask_aug, L)], axis=0)

    out_all, tinit_all = _run_fused(params, text_all, image_all, bias_all)

    cap_length = np.array([L] * B)
    orig = (out_all[:B], images, tinit_all[:B], cap_length)
    aug = (out_all[B:], images_aug, tinit_all[B:], cap_length)
    return orig, aug


def init_params(key, d_text, d_tran):
    ks = jax.random.split(key, 5)
    scale = 0.02
    return {
        "w_text": scale * jax.random.normal(ks[0], (d_text, d_tran), jnp.float32),
        "b_text": jnp.zeros((1, d_tran), jnp.float32),
        "w_att1": scale * jax.random.normal(ks[1], (d_tran, d_tran // 2), jnp.float32),
        "b_att1": scale * jax.random.normal(ks[2], (1, d_tran // 2), jnp.float32),
        "w_att2": scale * jax.random.normal(ks[3], (d_tran // 2, 1), jnp.float32),
        "b_att2": scale * jax.random.normal(ks[4], (1, 1), jnp.float32),
    }


if __name__ == "__main__":
    key = jax.random.PRNGKey(0)
    B, Lt, Li = 2, 8, 8
    D_TEXT, D_TRAN = 128, 128   # scaled-down stand-ins for BERT 768 / tran_dim 768

    k1, k2, k3, k4, kp = jax.random.split(key, 5)
    texts = jax.random.normal(k1, (B, Lt, D_TEXT), jnp.float32)     # BERT last_hidden_state stand-in
    images = jax.random.normal(k2, (B, Li, D_TRAN), jnp.float32)    # ViT last_hidden_state stand-in
    texts_aug = jax.random.normal(k3, (B, Lt, D_TEXT), jnp.float32)
    images_aug = jax.random.normal(k4, (B, Li, D_TRAN), jnp.float32)

    bert_mask = jnp.ones((B, Lt), jnp.int32)
    ti_mask = jnp.ones((B, Lt + Li), jnp.float32).at[1, -3:].set(0.0)
    ti_mask_aug = jnp.ones((B, Lt + Li), jnp.float32).at[0, -2:].set(0.0)
    label = jnp.zeros((B,), jnp.int32)

    params = init_params(kp, D_TEXT, D_TRAN)

    orig, aug = tensorboard_model_forward(
        params, texts, bert_mask, images, ti_mask,
        texts_aug, bert_mask, images_aug, ti_mask_aug, label)
    jax.block_until_ready(orig[0])
    jax.block_until_ready(aug[0])
    jax.block_until_ready(orig[2])
    jax.block_until_ready(aug[2])

    # plain-JAX f32 reference (mirrors the PyTorch masked_fill / softmax path)
    def ref(text_feats, image_feats, m):
        t = _activate(text_feats @ params["w_text"] + params["b_text"][0])
        ti = jnp.concatenate([t, image_feats], axis=1)
        h = _activate(ti @ params["w_att1"] + params["b_att1"][0])
        s = (h @ params["w_att2"] + params["b_att2"][0])[..., 0]
        s = jnp.where(m[:, : ti.shape[1]] == 0, -1000000000.0, s)
        a = jax.nn.softmax(s, axis=-1)
        return jnp.sum(a[..., None] * ti, axis=1), t

    ref_o, ref_t = ref(texts, images, ti_mask)
    ref_oa, ref_ta = ref(texts_aug, images_aug, ti_mask_aug)
    # bf16 MXU inputs + bf16 text_init writeback -> looser tolerance than pure f32.
    tol = dict(atol=2e-2, rtol=2e-2)
    assert np.allclose(np.asarray(orig[0]), np.asarray(ref_o), **tol)
    assert np.allclose(np.asarray(orig[2], dtype=np.float32), np.asarray(ref_t), **tol)
    assert np.allclose(np.asarray(aug[0]), np.asarray(ref_oa), **tol)
    assert np.allclose(np.asarray(aug[2], dtype=np.float32), np.asarray(ref_ta), **tol)
    print("KERNEL_OK")
</pallas_src>

<mosaic_0001>
module attributes {stable_mosaic.version = 11 : i64} {
  func.func @_fused_att_kernel(%arg0: i32, %arg1: memref<2x8x128xbf16, #tpu.memory_space<vmem>>, %arg2: memref<2x8x128xbf16, #tpu.memory_space<vmem>>, %arg3: memref<2x1x16xf32, #tpu.memory_space<vmem>>, %arg4: memref<128x128xbf16, #tpu.memory_space<vmem>>, %arg5: memref<1x128xf32, #tpu.memory_space<vmem>>, %arg6: memref<128x64xbf16, #tpu.memory_space<vmem>>, %arg7: memref<1x64xf32, #tpu.memory_space<vmem>>, %arg8: memref<1x64xf32, #tpu.memory_space<vmem>>, %arg9: memref<2x1x128xf32, #tpu.memory_space<vmem>>, %arg10: memref<2x8x128xbf16, #tpu.memory_space<vmem>>) attributes {dimension_semantics = [#tpu.dimension_semantics<parallel>], iteration_bounds = array<i64: 2>, scalar_prefetch = 0 : i64, scratch_operands = 0 : i64, tpu.core_type = #tpu.core_type<tc>, window_params = [{transform_indices = @transform_0, window_bounds = array<i64: 2, 8, 128>}, {transform_indices = @transform_1, window_bounds = array<i64: 2, 8, 128>}, {transform_indices = @transform_2, window_bounds = array<i64: 2, 1, 16>}, {pipeline_mode = #tpu.pipeline_mode<synchronous>, transform_indices = @transform_3, window_bounds = array<i64: 128, 128>}, {pipeline_mode = #tpu.pipeline_mode<synchronous>, transform_indices = @transform_4, window_bounds = array<i64: 1, 128>}, {pipeline_mode = #tpu.pipeline_mode<synchronous>, transform_indices = @transform_5, window_bounds = array<i64: 128, 64>}, {pipeline_mode = #tpu.pipeline_mode<synchronous>, transform_indices = @transform_6, window_bounds = array<i64: 1, 64>}, {pipeline_mode = #tpu.pipeline_mode<synchronous>, transform_indices = @transform_7, window_bounds = array<i64: 1, 64>}, {transform_indices = @transform_8, window_bounds = array<i64: 2, 1, 128>}, {transform_indices = @transform_9, window_bounds = array<i64: 2, 8, 128>}]} {
    %c0 = arith.constant 0 : index
    %c0_0 = arith.constant 0 : index
    %c0_1 = arith.constant 0 : index
    %0 = vector.load %arg1[%c0, %c0_0, %c0_1] : memref<2x8x128xbf16, #tpu.memory_space<vmem>>, vector<2x8x128xbf16>
    %1 = vector.shape_cast %0 : vector<2x8x128xbf16> to vector<16x128xbf16>
    %c0_2 = arith.constant 0 : index
    %c0_3 = arith.constant 0 : index
    %2 = vector.load %arg4[%c0_2, %c0_3] : memref<128x128xbf16, #tpu.memory_space<vmem>>, vector<128x128xbf16>
    %cst = arith.constant dense<0.000000e+00> : vector<16x128xf32>
    %3 = tpu.matmul %1, %2, %cst {dimension_numbers = #tpu.dot_dimension_numbers<[1], [0], [0], [1], [0, 0, 1, 1], [], []>} : vector<16x128xbf16>, vector<128x128xbf16>, vector<16x128xf32> -> vector<16x128xf32>
    %c0_4 = arith.constant 0 : index
    %c0_5 = arith.constant 0 : index
    %4 = vector.load %arg5[%c0_4, %c0_5] : memref<1x128xf32, #tpu.memory_space<vmem>>, vector<1x128xf32>
    %5 = vector.broadcast %4 : vector<1x128xf32> to vector<16x128xf32>
    %6 = arith.addf %3, %5 : vector<16x128xf32>
    %cst_6 = arith.constant 0.000000e+00 : f32
    %7 = vector.broadcast %cst_6 : f32 to vector<16x128xf32>
    %8 = arith.maximumf %6, %7 : vector<16x128xf32>
    %9 = vector.shape_cast %8 : vector<16x128xf32> to vector<2x8x128xf32>
    %10 = arith.truncf %9 : vector<2x8x128xf32> to vector<2x8x128xbf16>
    %c0_7 = arith.constant 0 : index
    %c0_8 = arith.constant 0 : index
    %c0_9 = arith.constant 0 : index
    %11 = vector.load %arg10[%c0_7, %c0_8, %c0_9] : memref<2x8x128xbf16, #tpu.memory_space<vmem>>, vector<2x8x128xbf16>
    tpu.vector_store %arg10[%c0_7, %c0_8, %c0_9], %10 {strides = array<i32>} : memref<2x8x128xbf16, #tpu.memory_space<vmem>>, vector<2x8x128xbf16>,
    %c0_10 = arith.constant 0 : index
    %c0_11 = arith.constant 0 : index
    %12 = vector.load %arg7[%c0_10, %c0_11] : memref<1x64xf32, #tpu.memory_space<vmem>>, vector<1x64xf32>
    %13 = arith.truncf %8 : vector<16x128xf32> to vector<16x128xbf16>
    %c0_12 = arith.constant 0 : index
    %c0_13 = arith.constant 0 : index
    %14 = vector.load %arg6[%c0_12, %c0_13] : memref<128x64xbf16, #tpu.memory_space<vmem>>, vector<128x64xbf16>
    %cst_14 = arith.constant dense<0.000000e+00> : vector<16x64xf32>
    %15 = tpu.matmul %13, %14, %cst_14 {dimension_numbers = #tpu.dot_dimension_numbers<[1], [0], [0], [1], [0, 0, 1, 1], [], []>} : vector<16x128xbf16>, vector<128x64xbf16>, vector<16x64xf32> -> vector<16x64xf32>
    %16 = vector.broadcast %12 : vector<1x64xf32> to vector<16x64xf32>
    %17 = arith.addf %15, %16 : vector<16x64xf32>
    %cst_15 = arith.constant 0.000000e+00 : f32
    %18 = vector.broadcast %cst_15 : f32 to vector<16x64xf32>
    %19 = arith.maximumf %17, %18 : vector<16x64xf32>
    %c0_16 = arith.constant 0 : index
    %c0_17 = arith.constant 0 : index
    %c0_18 = arith.constant 0 : index
    %20 = vector.load %arg2[%c0_16, %c0_17, %c0_18] : memref<2x8x128xbf16, #tpu.memory_space<vmem>>, vector<2x8x128xbf16>
    %21 = vector.shape_cast %20 : vector<2x8x128xbf16> to vector<16x128xbf16>
    %c0_19 = arith.constant 0 : index
    %c0_20 = arith.constant 0 : index
    %22 = vector.load %arg6[%c0_19, %c0_20] : memref<128x64xbf16, #tpu.memory_space<vmem>>, vector<128x64xbf16>
    %cst_21 = arith.constant dense<0.000000e+00> : vector<16x64xf32>
    %23 = tpu.matmul %21, %22, %cst_21 {dimension_numbers = #tpu.dot_dimension_numbers<[1], [0], [0], [1], [0, 0, 1, 1], [], []>} : vector<16x128xbf16>, vector<128x64xbf16>, vector<16x64xf32> -> vector<16x64xf32>
    %24 = vector.broadcast %12 : vector<1x64xf32> to vector<16x64xf32>
    %25 = arith.addf %23, %24 : vector<16x64xf32>
    %cst_22 = arith.constant 0.000000e+00 : f32
    %26 = vector.broadcast %cst_22 : f32 to vector<16x64xf32>
    %27 = arith.maximumf %25, %26 : vector<16x64xf32>
    %c0_23 = arith.constant 0 : index
    %c0_24 = arith.constant 0 : index
    %28 = vector.load %arg8[%c0_23, %c0_24] : memref<1x64xf32, #tpu.memory_space<vmem>>, vector<1x64xf32>
    %29 = vector.broadcast %28 : vector<1x64xf32> to vector<16x64xf32>
    %30 = arith.mulf %19, %29 : vector<16x64xf32>
    %31 = vector.shape_cast %30 : vector<16x64xf32> to vector<2x8x64xf32>
    %cst_25 = arith.constant dense<0.000000e+00> : vector<2x8xf32>
    %32 = vector.multi_reduction <add>, %31, %cst_25 [2] : vector<2x8x64xf32> to vector<2x8xf32>
    %33 = vector.broadcast %28 : vector<1x64xf32> to vector<16x64xf32>
    %34 = arith.mulf %27, %33 : vector<16x64xf32>
    %35 = vector.shape_cast %34 : vector<16x64xf32> to vector<2x8x64xf32>
    %cst_26 = arith.constant dense<0.000000e+00> : vector<2x8xf32>
    %36 = vector.multi_reduction <add>, %35, %cst_26 [2] : vector<2x8x64xf32> to vector<2x8xf32>
    %37 = tpu.concatenate %32, %36 in 1 : vector<2x8xf32>, vector<2x8xf32> -> vector<2x16xf32>
    %c0_27 = arith.constant 0 : index
    %c0_28 = arith.constant 0 : index
    %c0_29 = arith.constant 0 : index
    %38 = vector.load %arg3[%c0_27, %c0_28, %c0_29] : memref<2x1x16xf32, #tpu.memory_space<vmem>>, vector<2x1x16xf32>
    %39 = vector.shape_cast %38 : vector<2x1x16xf32> to vector<2x16xf32>
    %40 = arith.addf %37, %39 : vector<2x16xf32>
    %cst_30 = arith.constant dense<0xFF800000> : vector<2xf32>
    %41 = vector.multi_reduction <maximumf>, %40, %cst_30 [1] : vector<2x16xf32> to vector<2xf32>
    %42 = vector.shape_cast %41 : vector<2xf32> to vector<2x1xf32>
    %43 = vector.broadcast %42 : vector<2x1xf32> to vector<2x16xf32>
    %44 = arith.subf %40, %43 : vector<2x16xf32>
    %45 = math.exp %44 : vector<2x16xf32>
    %cst_31 = arith.constant dense<0.000000e+00> : vector<2xf32>
    %46 = vector.multi_reduction <add>, %45, %cst_31 [1] : vector<2x16xf32> to vector<2xf32>
    %47 = vector.shape_cast %46 : vector<2xf32> to vector<2x1xf32>
    %48 = tpu.reciprocal %47 {approx = true} : vector<2x1xf32> -> vector<2x1xf32>
    %49 = vector.broadcast %48 : vector<2x1xf32> to vector<2x16xf32>
    %50 = arith.mulf %45, %49 : vector<2x16xf32>
    %51 = vector.extract_strided_slice %50 {offsets = [0, 0], sizes = [2, 8], strides = [1, 1]} : vector<2x16xf32> to vector<2x8xf32>
    %52 = vector.extract_strided_slice %50 {offsets = [0, 8], sizes = [2, 8], strides = [1, 1]} : vector<2x16xf32> to vector<2x8xf32>
    %53 = vector.shape_cast %51 : vector<2x8xf32> to vector<2x8x1xf32>
    %54 = vector.broadcast %53 : vector<2x8x1xf32> to vector<2x8x128xf32>
    %55 = arith.mulf %54, %9 : vector<2x8x128xf32>
    %cst_32 = arith.constant dense<0.000000e+00> : vector<2x128xf32>
    %56 = vector.multi_reduction <add>, %55, %cst_32 [1] : vector<2x8x128xf32> to vector<2x128xf32>
    %57 = vector.shape_cast %52 : vector<2x8xf32> to vector<2x8x1xf32>
    %c0_33 = arith.constant 0 : index
    %c0_34 = arith.constant 0 : index
    %c0_35 = arith.constant 0 : index
    %58 = vector.load %arg2[%c0_33, %c0_34, %c0_35] : memref<2x8x128xbf16, #tpu.memory_space<vmem>>, vector<2x8x128xbf16>
    %59 = arith.extf %58 : vector<2x8x128xbf16> to vector<2x8x128xf32>
    %60 = vector.broadcast %57 : vector<2x8x1xf32> to vector<2x8x128xf32>
    %61 = arith.mulf %60, %59 : vector<2x8x128xf32>
    %cst_36 = arith.constant dense<0.000000e+00> : vector<2x128xf32>
    %62 = vector.multi_reduction <add>, %61, %cst_36 [1] : vector<2x8x128xf32> to vector<2x128xf32>
    %63 = arith.addf %56, %62 : vector<2x128xf32>
    %64 = vector.shape_cast %63 : vector<2x128xf32> to vector<2x1x128xf32>
    %c0_37 = arith.constant 0 : index
    %c0_38 = arith.constant 0 : index
    %c0_39 = arith.constant 0 : index
    %65 = vector.load %arg9[%c0_37, %c0_38, %c0_39] : memref<2x1x128xf32, #tpu.memory_space<vmem>>, vector<2x1x128xf32>
    tpu.vector_store %arg9[%c0_37, %c0_38, %c0_39], %64 {strides = array<i32>} : memref<2x1x128xf32, #tpu.memory_space<vmem>>, vector<2x1x128xf32>,
    return
  }
  func.func @transform_0(%arg0: i32) -> (i32, i32, i32) {
    %c0_i32 = arith.constant 0 : i32
    %c0_i32_0 = arith.constant 0 : i32
    %c0_i32_1 = arith.constant 0 : i32
    return %arg0, %c0_i32, %c0_i32_0 : i32, i32, i32
  }
  func.func @transform_1(%arg0: i32) -> (i32, i32, i32) {
    %c0_i32 = arith.constant 0 : i32
    %c0_i32_0 = arith.constant 0 : i32
    %c0_i32_1 = arith.constant 0 : i32
    return %arg0, %c0_i32, %c0_i32_0 : i32, i32, i32
  }
  func.func @transform_2(%arg0: i32) -> (i32, i32, i32) {
    %c0_i32 = arith.constant 0 : i32
    %c0_i32_0 = arith.constant 0 : i32
    %c0_i32_1 = arith.constant 0 : i32
    return %arg0, %c0_i32, %c0_i32_0 : i32, i32, i32
  }
  func.func @transform_3(%arg0: i32) -> (i32, i32) {
    %c0_i32 = arith.constant 0 : i32
    %c0_i32_0 = arith.constant 0 : i32
    %c0_i32_1 = arith.constant 0 : i32
    return %c0_i32, %c0_i32_0 : i32, i32
  }
  func.func @transform_4(%arg0: i32) -> (i32, i32) {
    %c0_i32 = arith.constant 0 : i32
    %c0_i32_0 = arith.constant 0 : i32
    %c0_i32_1 = arith.constant 0 : i32
    return %c0_i32, %c0_i32_0 : i32, i32
  }
  func.func @transform_5(%arg0: i32) -> (i32, i32) {
    %c0_i32 = arith.constant 0 : i32
    %c0_i32_0 = arith.constant 0 : i32
    %c0_i32_1 = arith.constant 0 : i32
    return %c0_i32, %c0_i32_0 : i32, i32
  }
  func.func @transform_6(%arg0: i32) -> (i32, i32) {
    %c0_i32 = arith.constant 0 : i32
    %c0_i32_0 = arith.constant 0 : i32
    %c0_i32_1 = arith.constant 0 : i32
    return %c0_i32, %c0_i32_0 : i32, i32
  }
  func.func @transform_7(%arg0: i32) -> (i32, i32) {
    %c0_i32 = arith.constant 0 : i32
    %c0_i32_0 = arith.constant 0 : i32
    %c0_i32_1 = arith.constant 0 : i32
    return %c0_i32, %c0_i32_0 : i32, i32
  }
  func.func @transform_8(%arg0: i32) -> (i32, i32, i32) {
    %c0_i32 = arith.constant 0 : i32
    %c0_i32_0 = arith.constant 0 : i32
    %c0_i32_1 = arith.constant 0 : i32
    return %arg0, %c0_i32, %c0_i32_0 : i32, i32, i32
  }
  func.func @transform_9(%arg0: i32) -> (i32, i32, i32) {
    %c0_i32 = arith.constant 0 : i32
    %c0_i32_0 = arith.constant 0 : i32
    %c0_i32_1 = arith.constant 0 : i32
    return %arg0, %c0_i32, %c0_i32_0 : i32, i32, i32
  }
}

module attributes {stable_mosaic.version = 11 : i64} {
  func.func @_fused_att_kernel(%arg0: i32, %arg1: memref<2x8x128xbf16, #tpu.memory_space<vmem>>, %arg2: memref<2x8x128xbf16, #tpu.memory_space<vmem>>, %arg3: memref<2x1x16xf32, #tpu.memory_space<vmem>>, %arg4: memref<128x128xbf16, #tpu.memory_space<vmem>>, %arg5: memref<1x128xf32, #tpu.memory_space<vmem>>, %arg6: memref<128x64xbf16, #tpu.memory_space<vmem>>, %arg7: memref<1x64xf32, #tpu.memory_space<vmem>>, %arg8: memref<1x64xf32, #tpu.memory_space<vmem>>, %arg9: memref<2x1x128xf32, #tpu.memory_space<vmem>>, %arg10: memref<2x8x128xbf16, #tpu.memory_space<vmem>>) attributes {dimension_semantics = [#tpu.dimension_semantics<parallel>], iteration_bounds = array<i64: 2>, scalar_prefetch = 0 : i64, scratch_operands = 0 : i64, tpu.core_type = #tpu.core_type<tc>, window_params = [{transform_indices = @transform_0, window_bounds = array<i64: 2, 8, 128>}, {transform_indices = @transform_1, window_bounds = array<i64: 2, 8, 128>}, {transform_indices = @transform_2, window_bounds = array<i64: 2, 1, 16>}, {pipeline_mode = #tpu.pipeline_mode<synchronous>, transform_indices = @transform_3, window_bounds = array<i64: 128, 128>}, {pipeline_mode = #tpu.pipeline_mode<synchronous>, transform_indices = @transform_4, window_bounds = array<i64: 1, 128>}, {pipeline_mode = #tpu.pipeline_mode<synchronous>, transform_indices = @transform_5, window_bounds = array<i64: 128, 64>}, {pipeline_mode = #tpu.pipeline_mode<synchronous>, transform_indices = @transform_6, window_bounds = array<i64: 1, 64>}, {pipeline_mode = #tpu.pipeline_mode<synchronous>, transform_indices = @transform_7, window_bounds = array<i64: 1, 64>}, {transform_indices = @transform_8, window_bounds = array<i64: 2, 1, 128>}, {transform_indices = @transform_9, window_bounds = array<i64: 2, 8, 128>}]} {
    %c0 = arith.constant 0 : index
    %c0_0 = arith.constant 0 : index
    %c0_1 = arith.constant 0 : index
    %0 = vector.load %arg1[%c0, %c0_0, %c0_1] : memref<2x8x128xbf16, #tpu.memory_space<vmem>>, vector<2x8x128xbf16>
    %1 = vector.shape_cast %0 : vector<2x8x128xbf16> to vector<16x128xbf16>
    %c0_2 = arith.constant 0 : index
    %c0_3 = arith.constant 0 : index
    %2 = vector.load %arg4[%c0_2, %c0_3] : memref<128x128xbf16, #tpu.memory_space<vmem>>, vector<128x128xbf16>
    %cst = arith.constant dense<0.000000e+00> : vector<16x128xf32>
    %3 = tpu.matmul %1, %2, %cst {dimension_numbers = #tpu.dot_dimension_numbers<[1], [0], [0], [1], [0, 0, 1, 1], [], []>} : vector<16x128xbf16>, vector<128x128xbf16>, vector<16x128xf32> -> vector<16x128xf32>
    %c0_4 = arith.constant 0 : index
    %c0_5 = arith.constant 0 : index
    %4 = vector.load %arg5[%c0_4, %c0_5] : memref<1x128xf32, #tpu.memory_space<vmem>>, vector<1x128xf32>
    %5 = vector.broadcast %4 : vector<1x128xf32> to vector<16x128xf32>
    %6 = arith.addf %3, %5 : vector<16x128xf32>
    %cst_6 = arith.constant 0.000000e+00 : f32
    %7 = vector.broadcast %cst_6 : f32 to vector<16x128xf32>
    %8 = arith.maximumf %6, %7 : vector<16x128xf32>
    %9 = vector.shape_cast %8 : vector<16x128xf32> to vector<2x8x128xf32>
    %10 = arith.truncf %9 : vector<2x8x128xf32> to vector<2x8x128xbf16>
    %c0_7 = arith.constant 0 : index
    %c0_8 = arith.constant 0 : index
    %c0_9 = arith.constant 0 : index
    %11 = vector.load %arg10[%c0_7, %c0_8, %c0_9] : memref<2x8x128xbf16, #tpu.memory_space<vmem>>, vector<2x8x128xbf16>
    tpu.vector_store %arg10[%c0_7, %c0_8, %c0_9], %10 {strides = array<i32>} : memref<2x8x128xbf16, #tpu.memory_space<vmem>>, vector<2x8x128xbf16>,
    %c0_10 = arith.constant 0 : index
    %c0_11 = arith.constant 0 : index
    %12 = vector.load %arg7[%c0_10, %c0_11] : memref<1x64xf32, #tpu.memory_space<vmem>>, vector<1x64xf32>
    %13 = arith.truncf %8 : vector<16x128xf32> to vector<16x128xbf16>
    %c0_12 = arith.constant 0 : index
    %c0_13 = arith.constant 0 : index
    %14 = vector.load %arg6[%c0_12, %c0_13] : memref<128x64xbf16, #tpu.memory_space<vmem>>, vector<128x64xbf16>
    %cst_14 = arith.constant dense<0.000000e+00> : vector<16x64xf32>
    %15 = tpu.matmul %13, %14, %cst_14 {dimension_numbers = #tpu.dot_dimension_numbers<[1], [0], [0], [1], [0, 0, 1, 1], [], []>} : vector<16x128xbf16>, vector<128x64xbf16>, vector<16x64xf32> -> vector<16x64xf32>
    %16 = vector.broadcast %12 : vector<1x64xf32> to vector<16x64xf32>
    %17 = arith.addf %15, %16 : vector<16x64xf32>
    %cst_15 = arith.constant 0.000000e+00 : f32
    %18 = vector.broadcast %cst_15 : f32 to vector<16x64xf32>
    %19 = arith.maximumf %17, %18 : vector<16x64xf32>
    %c0_16 = arith.constant 0 : index
    %c0_17 = arith.constant 0 : index
    %c0_18 = arith.constant 0 : index
    %20 = vector.load %arg2[%c0_16, %c0_17, %c0_18] : memref<2x8x128xbf16, #tpu.memory_space<vmem>>, vector<2x8x128xbf16>
    %21 = vector.shape_cast %20 : vector<2x8x128xbf16> to vector<16x128xbf16>
    %c0_19 = arith.constant 0 : index
    %c0_20 = arith.constant 0 : index
    %22 = vector.load %arg6[%c0_19, %c0_20] : memref<128x64xbf16, #tpu.memory_space<vmem>>, vector<128x64xbf16>
    %cst_21 = arith.constant dense<0.000000e+00> : vector<16x64xf32>
    %23 = tpu.matmul %21, %22, %cst_21 {dimension_numbers = #tpu.dot_dimension_numbers<[1], [0], [0], [1], [0, 0, 1, 1], [], []>} : vector<16x128xbf16>, vector<128x64xbf16>, vector<16x64xf32> -> vector<16x64xf32>
    %24 = vector.broadcast %12 : vector<1x64xf32> to vector<16x64xf32>
    %25 = arith.addf %23, %24 : vector<16x64xf32>
    %cst_22 = arith.constant 0.000000e+00 : f32
    %26 = vector.broadcast %cst_22 : f32 to vector<16x64xf32>
    %27 = arith.maximumf %25, %26 : vector<16x64xf32>
    %c0_23 = arith.constant 0 : index
    %c0_24 = arith.constant 0 : index
    %28 = vector.load %arg8[%c0_23, %c0_24] : memref<1x64xf32, #tpu.memory_space<vmem>>, vector<1x64xf32>
    %29 = vector.broadcast %28 : vector<1x64xf32> to vector<16x64xf32>
    %30 = arith.mulf %19, %29 : vector<16x64xf32>
    %31 = vector.shape_cast %30 : vector<16x64xf32> to vector<2x8x64xf32>
    %cst_25 = arith.constant dense<0.000000e+00> : vector<2x8xf32>
    %32 = vector.multi_reduction <add>, %31, %cst_25 [2] : vector<2x8x64xf32> to vector<2x8xf32>
    %33 = vector.broadcast %28 : vector<1x64xf32> to vector<16x64xf32>
    %34 = arith.mulf %27, %33 : vector<16x64xf32>
    %35 = vector.shape_cast %34 : vector<16x64xf32> to vector<2x8x64xf32>
    %cst_26 = arith.constant dense<0.000000e+00> : vector<2x8xf32>
    %36 = vector.multi_reduction <add>, %35, %cst_26 [2] : vector<2x8x64xf32> to vector<2x8xf32>
    %37 = tpu.concatenate %32, %36 in 1 : vector<2x8xf32>, vector<2x8xf32> -> vector<2x16xf32>
    %c0_27 = arith.constant 0 : index
    %c0_28 = arith.constant 0 : index
    %c0_29 = arith.constant 0 : index
    %38 = vector.load %arg3[%c0_27, %c0_28, %c0_29] : memref<2x1x16xf32, #tpu.memory_space<vmem>>, vector<2x1x16xf32>
    %39 = vector.shape_cast %38 : vector<2x1x16xf32> to vector<2x16xf32>
    %40 = arith.addf %37, %39 : vector<2x16xf32>
    %cst_30 = arith.constant dense<0xFF800000> : vector<2xf32>
    %41 = vector.multi_reduction <maximumf>, %40, %cst_30 [1] : vector<2x16xf32> to vector<2xf32>
    %42 = vector.shape_cast %41 : vector<2xf32> to vector<2x1xf32>
    %43 = vector.broadcast %42 : vector<2x1xf32> to vector<2x16xf32>
    %44 = arith.subf %40, %43 : vector<2x16xf32>
    %45 = math.exp %44 : vector<2x16xf32>
    %cst_31 = arith.constant dense<0.000000e+00> : vector<2xf32>
    %46 = vector.multi_reduction <add>, %45, %cst_31 [1] : vector<2x16xf32> to vector<2xf32>
    %47 = vector.shape_cast %46 : vector<2xf32> to vector<2x1xf32>
    %48 = tpu.reciprocal %47 {approx = true} : vector<2x1xf32> -> vector<2x1xf32>
    %49 = vector.broadcast %48 : vector<2x1xf32> to vector<2x16xf32>
    %50 = arith.mulf %45, %49 : vector<2x16xf32>
    %51 = vector.extract_strided_slice %50 {offsets = [0, 0], sizes = [2, 8], strides = [1, 1]} : vector<2x16xf32> to vector<2x8xf32>
    %52 = vector.extract_strided_slice %50 {offsets = [0, 8], sizes = [2, 8], strides = [1, 1]} : vector<2x16xf32> to vector<2x8xf32>
    %53 = vector.shape_cast %51 : vector<2x8xf32> to vector<2x8x1xf32>
    %54 = vector.broadcast %53 : vector<2x8x1xf32> to vector<2x8x128xf32>
    %55 = arith.mulf %54, %9 : vector<2x8x128xf32>
    %cst_32 = arith.constant dense<0.000000e+00> : vector<2x128xf32>
    %56 = vector.multi_reduction <add>, %55, %cst_32 [1] : vector<2x8x128xf32> to vector<2x128xf32>
    %57 = vector.shape_cast %52 : vector<2x8xf32> to vector<2x8x1xf32>
    %c0_33 = arith.constant 0 : index
    %c0_34 = arith.constant 0 : index
    %c0_35 = arith.constant 0 : index
    %58 = vector.load %arg2[%c0_33, %c0_34, %c0_35] : memref<2x8x128xbf16, #tpu.memory_space<vmem>>, vector<2x8x128xbf16>
    %59 = arith.extf %58 : vector<2x8x128xbf16> to vector<2x8x128xf32>
    %60 = vector.broadcast %57 : vector<2x8x1xf32> to vector<2x8x128xf32>
    %61 = arith.mulf %60, %59 : vector<2x8x128xf32>
    %cst_36 = arith.constant dense<0.000000e+00> : vector<2x128xf32>
    %62 = vector.multi_reduction <add>, %61, %cst_36 [1] : vector<2x8x128xf32> to vector<2x128xf32>
    %63 = arith.addf %56, %62 : vector<2x128xf32>
    %64 = vector.shape_cast %63 : vector<2x128xf32> to vector<2x1x128xf32>
    %c0_37 = arith.constant 0 : index
    %c0_38 = arith.constant 0 : index
    %c0_39 = arith.constant 0 : index
    %65 = vector.load %arg9[%c0_37, %c0_38, %c0_39] : memref<2x1x128xf32, #tpu.memory_space<vmem>>, vector<2x1x128xf32>
    tpu.vector_store %arg9[%c0_37, %c0_38, %c0_39], %64 {strides = array<i32>} : memref<2x1x128xf32, #tpu.memory_space<vmem>>, vector<2x1x128xf32>,
    return
  }
  func.func @transform_0(%arg0: i32) -> (i32, i32, i32) {
    %c0_i32 = arith.constant 0 : i32
    %c0_i32_0 = arith.constant 0 : i32
    %c0_i32_1 = arith.constant 0 : i32
    return %arg0, %c0_i32, %c0_i32_0 : i32, i32, i32
  }
  func.func @transform_1(%arg0: i32) -> (i32, i32, i32) {
    %c0_i32 = arith.constant 0 : i32
    %c0_i32_0 = arith.constant 0 : i32
    %c0_i32_1 = arith.constant 0 : i32
    return %arg0, %c0_i32, %c0_i32_0 : i32, i32, i32
  }
  func.func @transform_2(%arg0: i32) -> (i32, i32, i32) {
    %c0_i32 = arith.constant 0 : i32
    %c0_i32_0 = arith.constant 0 : i32
    %c0_i32_1 = arith.constant 0 : i32
    return %arg0, %c0_i32, %c0_i32_0 : i32, i32, i32
  }
  func.func @transform_3(%arg0: i32) -> (i32, i32) {
    %c0_i32 = arith.constant 0 : i32
    %c0_i32_0 = arith.constant 0 : i32
    %c0_i32_1 = arith.constant 0 : i32
    return %c0_i32, %c0_i32_0 : i32, i32
  }
  func.func @transform_4(%arg0: i32) -> (i32, i32) {
    %c0_i32 = arith.constant 0 : i32
    %c0_i32_0 = arith.constant 0 : i32
    %c0_i32_1 = arith.constant 0 : i32
    return %c0_i32, %c0_i32_0 : i32, i32
  }
  func.func @transform_5(%arg0: i32) -> (i32, i32) {
    %c0_i32 = arith.constant 0 : i32
    %c0_i32_0 = arith.constant 0 : i32
    %c0_i32_1 = arith.constant 0 : i32
    return %c0_i32, %c0_i32_0 : i32, i32
  }
  func.func @transform_6(%arg0: i32) -> (i32, i32) {
    %c0_i32 = arith.constant 0 : i32
    %c0_i32_0 = arith.constant 0 : i32
    %c0_i32_1 = arith.constant 0 : i32
    return %c0_i32, %c0_i32_0 : i32, i32
  }
  func.func @transform_7(%arg0: i32) -> (i32, i32) {
    %c0_i32 = arith.constant 0 : i32
    %c0_i32_0 = arith.constant 0 : i32
    %c0_i32_1 = arith.constant 0 : i32
    return %c0_i32, %c0_i32_0 : i32, i32
  }
  func.func @transform_8(%arg0: i32) -> (i32, i32, i32) {
    %c0_i32 = arith.constant 0 : i32
    %c0_i32_0 = arith.constant 0 : i32
    %c0_i32_1 = arith.constant 0 : i32
    return %arg0, %c0_i32, %c0_i32_0 : i32, i32, i32
  }
  func.func @transform_9(%arg0: i32) -> (i32, i32, i32) {
    %c0_i32 = arith.constant 0 : i32
    %c0_i32_0 = arith.constant 0 : i32
    %c0_i32_1 = arith.constant 0 : i32
    return %arg0, %c0_i32, %c0_i32_0 : i32, i32, i32
  }
}

</mosaic_0001>

<llo_original>
// kernel: tpu_custom_call.1
$region0: #{tpu_custom_call.1}
  #allocation0 [shape = 'u32[]', space=smem, size = 0x4, offset = 0x4, fixed_abs, tag = 'smem constant byte address 0x4 - core index']
  #allocation1 [shape = 'u32[144,128]{1,0:T(1,128)}', space=vmem, size = 0x12000, scoped, tag = 'internal scratch']
  %s0 = inlined_call_operand.vmem [shape: bf16[4,8,128], index: 0, kind: input, shape index: {}]
  %s1 = inlined_call_operand.vmem [shape: bf16[4,8,128], index: 1, kind: input, shape index: {}]
  %s2 = inlined_call_operand.vmem [shape: f32[4,1,16], index: 2, kind: input, shape index: {}]
  %s3 = inlined_call_operand.vmem [shape: bf16[128,128], index: 3, kind: input, shape index: {}]
  %s4 = inlined_call_operand.vmem [shape: f32[1,128], index: 4, kind: input, shape index: {}]
  %s5 = inlined_call_operand.vmem [shape: bf16[128,64], index: 5, kind: input, shape index: {}]
  %s6 = inlined_call_operand.vmem [shape: f32[1,64], index: 6, kind: input, shape index: {}]
  %s7 = inlined_call_operand.vmem [shape: f32[1,64], index: 7, kind: input, shape index: {}]
  %s8 = inlined_call_operand.hbm [shape: f32[4,1,128], index: 8, kind: output, shape index: {0}]
  %s9 = inlined_call_operand.hbm [shape: bf16[4,8,128], index: 9, kind: output, shape index: {1}]
  %10 = xla_tuple %s8, %s9
  %s11 = sld [smem:[#allocation0]]
  $region73: #{tpu_custom_call.1} parent=0
    _
  %s13 = ssub.s32 1, %s11
  %s14 = scalar_select 0, %s13, %s11
  $region1: #{tpu_custom_call.1} parent=0
    #allocation2 [shape = 'u8[2048]{0}', space=vmem, size = 0x800, scoped, tag = 'output window, operand 0']
    #allocation3 [shape = 's32[2]{0}', space=sflag, size = 0x8, scoped, tag = 'scoped memory for tpu_custom_call.1']
    #allocation4 [shape = 'u8[8192]{0}', space=vmem, size = 0x2000, scoped, tag = 'output window, operand 1']
    #allocation5 [shape = 's32[2]{0}', space=sflag, size = 0x8, scoped, tag = 'scoped memory for tpu_custom_call.1']
    %15 = vsyncpa [#allocation3], 0
    %s16 = scalar_lea.sflag [#allocation3], 1
    %17 = vsyncpa %s16, 0
    %18 = vsyncpa [#allocation5], 0
    %s19 = scalar_lea.sflag [#allocation5], 1
    %20 = vsyncpa %s19, 0
    loop: start=0, step=1, limit=4
    $region2: #{tpu_custom_call.1} parent=1 // loop_pre_header
      _
    $region3: #{tpu_custom_call.1} parent=1 // loop_header
      %s22 = sphi 0, %s26
      %p23 = scmp.ge.s32.totalorder %s22, 4
      %s32 = sphi 0, %s34
      %s35 = sphi 0, %s32
      %s36 = sphi 0, %s35
      %s52 = sphi 0, %s36
      %s58 = sphi 0, %s60
      %s61 = sphi 0, %s58
      %s62 = sphi 0, %s61
      %s78 = sphi 0, %s62
      %s84 = sphi 0, %s86
      %s87 = sphi 0, %s84
      %s88 = sphi 0, %s87
      %s104 = sphi 0, %s88
      %s108 = sphi 0, %s108
      %s110 = sphi 0, %s108
      %s111 = sphi 0, %s110
      %s125 = sphi 0, %s111
      %s129 = sphi 0, %s129
      %s131 = sphi 0, %s129
      %s132 = sphi 0, %s131
      %s146 = sphi 0, %s132
      %s150 = sphi 0, %s150
      %s152 = sphi 0, %s150
      %s153 = sphi 0, %s152
      %s167 = sphi 0, %s153
      %s171 = sphi 0, %s171
      %s173 = sphi 0, %s171
      %s174 = sphi 0, %s173
      %s188 = sphi 0, %s174
      %s192 = sphi 0, %s192
      %s194 = sphi 0, %s192
      %s195 = sphi 0, %s194
      %s209 = sphi 0, %s195
      %s215 = sphi 0, %s217
      %s218 = sphi 0, %s215
      %s219 = sphi 0, %s218
      %s235 = sphi 0, %s219
      %s241 = sphi 0, %s243
      %s244 = sphi 0, %s241
      %s245 = sphi 0, %s244
      %s261 = sphi 0, %s245
    $region4: #{tpu_custom_call.1} parent=1 // loop_header_branch
      %25 = sbr.rel (%p23) target = $region8
    $region5: #{tpu_custom_call.1} parent=1 // loop_body
      %s27 = ssub.s32 %s22, 1
      %s28 = ssub.s32 %s22, 2
      %s29 = sadd.s32 %s22, 1
      %s30 = ssub.s32 %s22, %s29
      %p31 = scmp.eq.s32.totalorder %s30, 0
      %s33 = sadd.s32 %s32, 1
      %s34 = scalar_select %p31, %s32, %s33
      %p37 = pneg %p31
      %p38 = scmp.eq.s32.totalorder %s22, 1
      %p39 = por %p37, %p38
      %p40 = scmp.ne.s32.totalorder %s32, %s35
      %p41 = scmp.eq.s32.totalorder %s22, 0
      %p42 = por %p40, %p41
      %p43 = scmp.ne.s32.totalorder %s32, %s35
      %p44 = scmp.eq.s32.totalorder %s27, 1
      %p45 = por %p43, %p44
      %p46 = scmp.ne.s32.totalorder %s35, %s36
      %p47 = scmp.eq.s32.totalorder %s27, 0
      %p48 = por %p46, %p47
      %p49 = scmp.ne.s32.totalorder %s35, %s36
      %p50 = scmp.eq.s32.totalorder %s28, 1
      %p51 = por %p49, %p50
      %p53 = scmp.ne.s32.totalorder %s36, %s52
      %p54 = scmp.eq.s32.totalorder %s28, 0
      %p55 = por %p53, %p54
      %s56 = ssub.s32 %s22, %s29
      %p57 = scmp.eq.s32.totalorder %s56, 0
      %s59 = sadd.s32 %s58, 1
      %s60 = scalar_select %p57, %s58, %s59
      %p63 = pneg %p57
      %p64 = scmp.eq.s32.totalorder %s22, 1
      %p65 = por %p63, %p64
      %p66 = scmp.ne.s32.totalorder %s58, %s61
      %p67 = scmp.eq.s32.totalorder %s22, 0
      %p68 = por %p66, %p67
      %p69 = scmp.ne.s32.totalorder %s58, %s61
      %p70 = scmp.eq.s32.totalorder %s27, 1
      %p71 = por %p69, %p70
      %p72 = scmp.ne.s32.totalorder %s61, %s62
      %p73 = scmp.eq.s32.totalorder %s27, 0
      %p74 = por %p72, %p73
      %p75 = scmp.ne.s32.totalorder %s61, %s62
      %p76 = scmp.eq.s32.totalorder %s28, 1
      %p77 = por %p75, %p76
      %p79 = scmp.ne.s32.totalorder %s62, %s78
      %p80 = scmp.eq.s32.totalorder %s28, 0
      %p81 = por %p79, %p80
      %s82 = ssub.s32 %s22, %s29
      %p83 = scmp.eq.s32.totalorder %s82, 0
      %s85 = sadd.s32 %s84, 1
      %s86 = scalar_select %p83, %s84, %s85
      %p89 = pneg %p83
      %p90 = scmp.eq.s32.totalorder %s22, 1
      %p91 = por %p89, %p90
      %p92 = scmp.ne.s32.totalorder %s84, %s87
      %p93 = scmp.eq.s32.totalorder %s22, 0
      %p94 = por %p92, %p93
      %p95 = scmp.ne.s32.totalorder %s84, %s87
      %p96 = scmp.eq.s32.totalorder %s27, 1
      %p97 = por %p95, %p96
      %p98 = scmp.ne.s32.totalorder %s87, %s88
      %p99 = scmp.eq.s32.totalorder %s27, 0
      %p100 = por %p98, %p99
      %p101 = scmp.ne.s32.totalorder %s87, %s88
      %p102 = scmp.eq.s32.totalorder %s28, 1
      %p103 = por %p101, %p102
      %p105 = scmp.ne.s32.totalorder %s88, %s104
      %p106 = scmp.eq.s32.totalorder %s28, 0
      %p107 = por %p105, %p106
      %s109 = sadd.s32 %s108, 1
      %p112 = scmp.eq.s32.totalorder %s22, 1
      %p113 = scmp.ne.s32.totalorder %s108, %s110
      %p114 = scmp.eq.s32.totalorder %s22, 0
      %p115 = por %p113, %p114
      %p116 = scmp.ne.s32.totalorder %s108, %s110
      %p117 = scmp.eq.s32.totalorder %s27, 1
      %p118 = por %p116, %p117
      %p119 = scmp.ne.s32.totalorder %s110, %s111
      %p120 = scmp.eq.s32.totalorder %s27, 0
      %p121 = por %p119, %p120
      %p122 = scmp.ne.s32.totalorder %s110, %s111
      %p123 = scmp.eq.s32.totalorder %s28, 1
      %p124 = por %p122, %p123
      %p126 = scmp.ne.s32.totalorder %s111, %s125
      %p127 = scmp.eq.s32.totalorder %s28, 0
      %p128 = por %p126, %p127
      %s130 = sadd.s32 %s129, 1
      %p133 = scmp.eq.s32.totalorder %s22, 1
      %p134 = scmp.ne.s32.totalorder %s129, %s131
      %p135 = scmp.eq.s32.totalorder %s22, 0
      %p136 = por %p134, %p135
      %p137 = scmp.ne.s32.totalorder %s129, %s131
      %p138 = scmp.eq.s32.totalorder %s27, 1
      %p139 = por %p137, %p138
      %p140 = scmp.ne.s32.totalorder %s131, %s132
      %p141 = scmp.eq.s32.totalorder %s27, 0
      %p142 = por %p140, %p141
      %p143 = scmp.ne.s32.totalorder %s131, %s132
      %p144 = scmp.eq.s32.totalorder %s28, 1
      %p145 = por %p143, %p144
      %p147 = scmp.ne.s32.totalorder %s132, %s146
      %p148 = scmp.eq.s32.totalorder %s28, 0
      %p149 = por %p147, %p148
      %s151 = sadd.s32 %s150, 1
      %p154 = scmp.eq.s32.totalorder %s22, 1
      %p155 = scmp.ne.s32.totalorder %s150, %s152
      %p156 = scmp.eq.s32.totalorder %s22, 0
      %p157 = por %p155, %p156
      %p158 = scmp.ne.s32.totalorder %s150, %s152
      %p159 = scmp.eq.s32.totalorder %s27, 1
      %p160 = por %p158, %p159
      %p161 = scmp.ne.s32.totalorder %s152, %s153
      %p162 = scmp.eq.s32.totalorder %s27, 0
      %p163 = por %p161, %p162
      %p164 = scmp.ne.s32.totalorder %s152, %s153
      %p165 = scmp.eq.s32.totalorder %s28, 1
      %p166 = por %p164, %p165
      %p168 = scmp.ne.s32.totalorder %s153, %s167
      %p169 = scmp.eq.s32.totalorder %s28, 0
      %p170 = por %p168, %p169
      %s172 = sadd.s32 %s171, 1
      %p175 = scmp.eq.s32.totalorder %s22, 1
      %p176 = scmp.ne.s32.totalorder %s171, %s173
      %p177 = scmp.eq.s32.totalorder %s22, 0
      %p178 = por %p176, %p177
      %p179 = scmp.ne.s32.totalorder %s171, %s173
      %p180 = scmp.eq.s32.totalorder %s27, 1
      %p181 = por %p179, %p180
      %p182 = scmp.ne.s32.totalorder %s173, %s174
      %p183 = scmp.eq.s32.totalorder %s27, 0
      %p184 = por %p182, %p183
      %p185 = scmp.ne.s32.totalorder %s173, %s174
      %p186 = scmp.eq.s32.totalorder %s28, 1
      %p187 = por %p185, %p186
      %p189 = scmp.ne.s32.totalorder %s174, %s188
      %p190 = scmp.eq.s32.totalorder %s28, 0
      %p191 = por %p189, %p190
      %s193 = sadd.s32 %s192, 1
      %p196 = scmp.eq.s32.totalorder %s22, 1
      %p197 = scmp.ne.s32.totalorder %s192, %s194
      %p198 = scmp.eq.s32.totalorder %s22, 0
      %p199 = por %p197, %p198
      %p200 = scmp.ne.s32.totalorder %s192, %s194
      %p201 = scmp.eq.s32.totalorder %s27, 1
      %p202 = por %p200, %p201
      %p203 = scmp.ne.s32.totalorder %s194, %s195
      %p204 = scmp.eq.s32.totalorder %s27, 0
      %p205 = por %p203, %p204
      %p206 = scmp.ne.s32.totalorder %s194, %s195
      %p207 = scmp.eq.s32.totalorder %s28, 1
      %p208 = por %p206, %p207
      %p210 = scmp.ne.s32.totalorder %s195, %s209
      %p211 = scmp.eq.s32.totalorder %s28, 0
      %p212 = por %p210, %p211
      %s213 = ssub.s32 %s22, %s29
      %p214 = scmp.eq.s32.totalorder %s213, 0
      %s216 = sadd.s32 %s215, 1
      %s217 = scalar_select %p214, %s215, %s216
      %p220 = pneg %p214
      %p221 = scmp.eq.s32.totalorder %s22, 1
      %p222 = por %p220, %p221
      %p223 = scmp.ne.s32.totalorder %s215, %s218
      %p224 = scmp.eq.s32.totalorder %s22, 0
      %p225 = por %p223, %p224
      %p226 = scmp.ne.s32.totalorder %s215, %s218
      %p227 = scmp.eq.s32.totalorder %s27, 1
      %p228 = por %p226, %p227
      %p229 = scmp.ne.s32.totalorder %s218, %s219
      %p230 = scmp.eq.s32.totalorder %s27, 0
      %p231 = por %p229, %p230
      %p232 = scmp.ne.s32.totalorder %s218, %s219
      %p233 = scmp.eq.s32.totalorder %s28, 1
      %p234 = por %p232, %p233
      %p236 = scmp.ne.s32.totalorder %s219, %s235
      %p237 = scmp.eq.s32.totalorder %s28, 0
      %p238 = por %p236, %p237
      %s239 = ssub.s32 %s22, %s29
      %p240 = scmp.eq.s32.totalorder %s239, 0
      %s242 = sadd.s32 %s241, 1
      %s243 = scalar_select %p240, %s241, %s242
      %p246 = pneg %p240
      %p247 = scmp.eq.s32.totalorder %s22, 1
      %p248 = por %p246, %p247
      %p249 = scmp.ne.s32.totalorder %s241, %s244
      %p250 = scmp.eq.s32.totalorder %s22, 0
      %p251 = por %p249, %p250
      %p252 = scmp.ne.s32.totalorder %s241, %s244
      %p253 = scmp.eq.s32.totalorder %s27, 1
      %p254 = por %p252, %p253
      %p255 = scmp.ne.s32.totalorder %s244, %s245
      %p256 = scmp.eq.s32.totalorder %s27, 0
      %p257 = por %p255, %p256
      %p258 = scmp.ne.s32.totalorder %s244, %s245
      %p259 = scmp.eq.s32.totalorder %s28, 1
      %p260 = por %p258, %p259
      %p262 = scmp.ne.s32.totalorder %s245, %s261
      %p263 = scmp.eq.s32.totalorder %s28, 0
      %p264 = por %p262, %p263
      %p265 = scmp.le.s32.totalorder 1, %s22
      %p266 = scmp.lt.s32.totalorder %s22, 3
      %p267 = pnand %p265, %p266
      %p268 = pneg %p267
      // Predicated region
      $region9: #{tpu_custom_call.1} parent=5 // pred_check
        _
      $region10: #{tpu_custom_call.1} parent=5 // pred_check_branch
        %270 = sbr.rel (%p267) target = $region12
      $region11: #{tpu_custom_call.1} parent=5 // pred_region
        %s271 = ssub.s32 %s22, 1
        // Predicated region
        $region13: #{tpu_custom_call.1} parent=11 // pred_check
          %p272 = pneg %p121
        $region14: #{tpu_custom_call.1} parent=11 // pred_check_branch
          %274 = sbr.rel (%p272) target = $region16
        $region15: #{tpu_custom_call.1} parent=11 // pred_region
          _
        $region16: #{tpu_custom_call.1} parent=11 // pred_fallthru
          _
        // Predicated region
        $region17: #{tpu_custom_call.1} parent=11 // pred_check
          %p275 = pneg %p142
        $region18: #{tpu_custom_call.1} parent=11 // pred_check_branch
          %277 = sbr.rel (%p275) target = $region20
        $region19: #{tpu_custom_call.1} parent=11 // pred_region
          _
        $region20: #{tpu_custom_call.1} parent=11 // pred_fallthru
          _
        // Predicated region
        $region21: #{tpu_custom_call.1} parent=11 // pred_check
          %p278 = pneg %p163
        $region22: #{tpu_custom_call.1} parent=11 // pred_check_branch
          %280 = sbr.rel (%p278) target = $region24
        $region23: #{tpu_custom_call.1} parent=11 // pred_region
          _
        $region24: #{tpu_custom_call.1} parent=11 // pred_fallthru
          _
        // Predicated region
        $region25: #{tpu_custom_call.1} parent=11 // pred_check
          %p281 = pneg %p184
        $region26: #{tpu_custom_call.1} parent=11 // pred_check_branch
          %283 = sbr.rel (%p281) target = $region28
        $region27: #{tpu_custom_call.1} parent=11 // pred_region
          _
        $region28: #{tpu_custom_call.1} parent=11 // pred_fallthru
          _
        // Predicated region
        $region29: #{tpu_custom_call.1} parent=11 // pred_check
          %p284 = pneg %p205
        $region30: #{tpu_custom_call.1} parent=11 // pred_check_branch
          %286 = sbr.rel (%p284) target = $region32
        $region31: #{tpu_custom_call.1} parent=11 // pred_region
          _
        $region32: #{tpu_custom_call.1} parent=11 // pred_fallthru
          _
      $region12: #{tpu_custom_call.1} parent=5 // pred_fallthru
        _
      %p287 = scmp.lt.s32.totalorder %s22, 2
      // Predicated region
      $region33: #{tpu_custom_call.1} parent=5 // pred_check
        %p288 = pneg %p287
      $region34: #{tpu_custom_call.1} parent=5 // pred_check_branch
        %290 = sbr.rel (%p288) target = $region36
      $region35: #{tpu_custom_call.1} parent=5 // pred_region
        // Predicated region
        $region37: #{tpu_custom_call.1} parent=35 // pred_check
          %p291 = pneg %p42
        $region38: #{tpu_custom_call.1} parent=35 // pred_check_branch
          %293 = sbr.rel (%p291) target = $region40
        $region39: #{tpu_custom_call.1} parent=35 // pred_region
          %s294 = smul.u32 2, %s22
          %p295 = scmp.lt.s32.totalorder %s294, 3
          %s296 = scalar_select %p295, %s294, 3
          %s297 = smul.addr %s296, 4
          %s298 = scalar_lea.vmem %s0, %s297
          %s299 = smul.u32 2, %s22
        $region40: #{tpu_custom_call.1} parent=35 // pred_fallthru
          _
        // Predicated region
        $region41: #{tpu_custom_call.1} parent=35 // pred_check
          %p300 = pneg %p68
        $region42: #{tpu_custom_call.1} parent=35 // pred_check_branch
          %302 = sbr.rel (%p300) target = $region44
        $region43: #{tpu_custom_call.1} parent=35 // pred_region
          %s303 = smul.u32 2, %s22
          %p304 = scmp.lt.s32.totalorder %s303, 3
          %s305 = scalar_select %p304, %s303, 3
          %s306 = smul.addr %s305, 4
          %s307 = scalar_lea.vmem %s1, %s306
          %s308 = smul.u32 2, %s22
        $region44: #{tpu_custom_call.1} parent=35 // pred_fallthru
          _
        // Predicated region
        $region45: #{tpu_custom_call.1} parent=35 // pred_check
          %p309 = pneg %p94
        $region46: #{tpu_custom_call.1} parent=35 // pred_check_branch
          %311 = sbr.rel (%p309) target = $region48
        $region47: #{tpu_custom_call.1} parent=35 // pred_region
          %s312 = smul.u32 2, %s22
          %p313 = scmp.lt.s32.totalorder %s312, 3
          %s314 = scalar_select %p313, %s312, 3
          %s315 = scalar_lea.vmem %s2, %s314
          %s316 = smul.u32 2, %s22
        $region48: #{tpu_custom_call.1} parent=35 // pred_fallthru
          _
      $region36: #{tpu_custom_call.1} parent=5 // pred_fallthru
        _
      %p317 = scmp.le.s32.totalorder 1, %s22
      %p318 = scmp.lt.s32.totalorder %s22, 3
      %p319 = pnand %p317, %p318
      %p320 = pneg %p319
      // Predicated region
      $region49: #{tpu_custom_call.1} parent=5 // pred_check
        _
      $region50: #{tpu_custom_call.1} parent=5 // pred_check_branch
        %322 = sbr.rel (%p319) target = $region52
      $region51: #{tpu_custom_call.1} parent=5 // pred_region
        %s323 = ssub.s32 %s22, 1
        %s324 = smul.u32 2, %s27
        %p325 = scmp.lt.s32.totalorder %s324, 3
        %s326 = scalar_select %p325, %s324, 3
        %s327 = smul.addr %s326, 4
        %s328 = scalar_lea.vmem %s0, %s327
        %p329 = pneg %p48
        %p330 = pneg %p45
        %s331 = smul.u32 2, %s27
        %p332 = scmp.lt.s32.totalorder %s331, 3
        %s333 = scalar_select %p332, %s331, 3
        %s334 = smul.addr %s333, 4
        %s335 = scalar_lea.vmem %s1, %s334
        %p336 = pneg %p74
        %p337 = pneg %p71
        %s338 = smul.u32 2, %s27
        %p339 = scmp.lt.s32.totalorder %s338, 3
        %s340 = scalar_select %p339, %s338, 3
        %s341 = scalar_lea.vmem %s2, %s340
        %p342 = pneg %p100
        %p343 = pneg %p97
        %p344 = pneg %p121
        %p345 = pneg %p118
        %p346 = pneg %p142
        %p347 = pneg %p139
        %p348 = pneg %p163
        %p349 = pneg %p160
        %p350 = pneg %p184
        %p351 = pneg %p181
        %p352 = pneg %p205
        %p353 = pneg %p202
        %p354 = pneg %p231
        %p355 = pneg %p228
        %s356 = sand.u32 %s218, 1
        %s357 = scalar_lea.sflag [#allocation3], %s356
        %s358 = sand.u32 %s218, 1
        %s359 = smul.addr %s358, 2
        %s360 = scalar_lea.vmem [#allocation2], %s359
        %p361 = pneg %p257
        %p362 = pneg %p254
        %s363 = sand.u32 %s244, 1
        %s364 = scalar_lea.sflag [#allocation5], %s363
        %s365 = sand.u32 %s244, 1
        %s366 = smul.addr %s365, 8
        %s367 = scalar_lea.vmem [#allocation4], %s366
        %s368 = smul.u32 2, %s27
        %p369 = scmp.lt.s32.totalorder %s368, 3
        %s370 = scalar_select %p369, %s368, 3
        %s371 = smul.addr %s370, 4
        %s372 = scalar_lea.vmem %s0, %s371
        %s373 = smul.u32 2, %s27
        %s374 = smul.u32 2, %s27
        %p375 = scmp.lt.s32.totalorder %s374, 3
        %s376 = scalar_select %p375, %s374, 3
        %s377 = smul.addr %s376, 4
        %s378 = scalar_lea.vmem %s1, %s377
        %s379 = smul.u32 2, %s27
        %s380 = smul.u32 2, %s27
        %p381 = scmp.lt.s32.totalorder %s380, 3
        %s382 = scalar_select %p381, %s380, 3
        %s383 = scalar_lea.vmem %s2, %s382
        %s384 = smul.u32 2, %s27
        %s385 = smul.u32 2, %s27
        %s386 = smul.u32 2, %s27
        %v388 = vld [vmem:[%s372] sm:$0xf]
        %v389 = vld [vmem:[%s372 + $0x4] sm:$0xf]
        %v390 = vld [vmem:[%s3] sm:$0xf]
        %v391 = vld [vmem:[%s3 + $0x4] sm:$0xf]
        %v392 = vld [vmem:[%s3 + $0x8] sm:$0xf]
        %v393 = vld [vmem:[%s3 + $0xc] sm:$0xf]
        %v394 = vld [vmem:[%s3 + $0x10] sm:$0xf]
        %v395 = vld [vmem:[%s3 + $0x14] sm:$0xf]
        %v396 = vld [vmem:[%s3 + $0x18] sm:$0xf]
        %v397 = vld [vmem:[%s3 + $0x1c] sm:$0xf]
        %v398 = vld [vmem:[%s3 + $0x20] sm:$0xf]
        %v399 = vld [vmem:[%s3 + $0x24] sm:$0xf]
        %v400 = vld [vmem:[%s3 + $0x28] sm:$0xf]
        %v401 = vld [vmem:[%s3 + $0x2c] sm:$0xf]
        %v402 = vld [vmem:[%s3 + $0x30] sm:$0xf]
        %v403 = vld [vmem:[%s3 + $0x34] sm:$0xf]
        %v404 = vld [vmem:[%s3 + $0x38] sm:$0xf]
        %v405 = vld [vmem:[%s3 + $0x3c] sm:$0xf]
        %v406 = vld [vmem:[%s4] sm:$0x1]
        %v408 = vlaneseq
        %v409 = vshrl.u32 %v408, 7
        %v410 = vsub.s32 0, %v409
        %v411 = vrot.slane %v406, %v410
        %v415 = vunpack.c.l.b16 %v388
        %v416 = vunpack.c.l.b16 %v389
        %v417 = vpack.c.b16 %v416, %v415
        %v435 = vunpack.c.l.b16 %v390
        %v436 = vunpack.c.l.b16 %v391
        %v437 = vunpack.c.l.b16 %v392
        %v438 = vunpack.c.l.b16 %v393
        %v439 = vunpack.c.l.b16 %v394
        %v440 = vunpack.c.l.b16 %v395
        %v441 = vunpack.c.l.b16 %v396
        %v442 = vunpack.c.l.b16 %v397
        %v443 = vunpack.c.l.b16 %v398
        %v444 = vunpack.c.l.b16 %v399
        %v445 = vunpack.c.l.b16 %v400
        %v446 = vunpack.c.l.b16 %v401
        %v447 = vunpack.c.l.b16 %v402
        %v448 = vunpack.c.l.b16 %v403
        %v449 = vunpack.c.l.b16 %v404
        %v450 = vunpack.c.l.b16 %v405
        %v451 = vpack.c.b16 %v436, %v435
        %v452 = vpack.c.b16 %v438, %v437
        %v453 = vpack.c.b16 %v440, %v439
        %v454 = vpack.c.b16 %v442, %v441
        %v455 = vpack.c.b16 %v444, %v443
        %v456 = vpack.c.b16 %v446, %v445
        %v457 = vpack.c.b16 %v448, %v447
        %v458 = vpack.c.b16 %v450, %v449
        %467 = vmatprep.subr.bf16.mxu0 0
        %468 = vmatpush1.bf16.msra.mxu0 %v451
        %469 = vmatprep.subr.bf16.mxu0 0
        %470 = vmatpush1.bf16.msra.mxu0 %v452
        %471 = vmatprep.subr.bf16.mxu0 0
        %472 = vmatpush1.bf16.msra.mxu0 %v453
        %473 = vmatprep.subr.bf16.mxu0 0
        %474 = vmatpush1.bf16.msra.mxu0 %v454
        %475 = vmatprep.subr.bf16.mxu0 0
        %476 = vmatpush1.bf16.msra.mxu0 %v455
        %477 = vmatprep.subr.bf16.mxu0 0
        %478 = vmatpush1.bf16.msra.mxu0 %v456
        %479 = vmatprep.subr.bf16.mxu0 0
        %480 = vmatpush1.bf16.msra.mxu0 %v457
        %481 = vmatprep.subr.bf16.mxu0 0
        %482 = vmatpush1.bf16.msra.mxu0 %v458
        %483 = vmatprep.subr.bf16.mxu0 0
        %484 = vmatpush1.bf16.msra.mxu0 0
        %485 = vmatprep.subr.bf16.mxu0 0
        %486 = vmatpush1.bf16.msra.mxu0 0
        %487 = vmatprep.subr.bf16.mxu0 0
        %488 = vmatpush1.bf16.msra.mxu0 0
        %489 = vmatprep.subr.bf16.mxu0 0
        %490 = vmatpush1.bf16.msra.mxu0 0
        %491 = vmatprep.subr.bf16.mxu0 0
        %492 = vmatpush1.bf16.msra.mxu0 0
        %493 = vmatprep.subr.bf16.mxu0 0
        %494 = vmatpush1.bf16.msra.mxu0 0
        %495 = vmatprep.subr.bf16.mxu0 0
        %496 = vmatpush1.bf16.msra.mxu0 0
        %497 = vmatprep.subr.bf16.mxu0 0
        %498 = vmatpush1.bf16.msra.mxu0 0
        %499 = vmatprep.mubr.bf16.mxu0 0
        %500 = vmatmul.mubr.bf16.gmra.mrb[0].mxu0 %v417
        %v501 = vpop.f32.mrb[0].mxu0
        %v502 = vadd.f32 %v411, %v501
        %v503 = vpop.f32.mrb[0].mxu0
        %v504 = vpop.f32.mrb[0].mxu0
        %v505 = vadd.f32 %v411, %v504
        %v506 = vpop.f32.mrb[0].mxu0
        %507 = vdwg.mxu0
        %v508 = vmax.f32 %v502, 0.0
        %v509 = vmax.f32 %v505, 0.0
        %v510 = vpack.c.bf16 %v508, %v508
        %v511 = vpack.c.bf16 %v509, %v509
        %512 = vst [vmem:[%s367] sm:$0xf] %v510
        %513 = vst [vmem:[%s367 + $0x4] sm:$0xf] %v511
        %v514 = vld [vmem:[%s6] sm:$0x1]
        %v515 = vpack.c.bf16 %v509, %v508
        %v516 = vld [vmem:[%s5] sm:$0xf]
        %v517 = vld [vmem:[%s5 + $0x4] sm:$0xf]
        %v518 = vld [vmem:[%s5 + $0x8] sm:$0xf]
        %v519 = vld [vmem:[%s5 + $0xc] sm:$0xf]
        %v520 = vld [vmem:[%s5 + $0x10] sm:$0xf]
        %v521 = vld [vmem:[%s5 + $0x14] sm:$0xf]
        %v522 = vld [vmem:[%s5 + $0x18] sm:$0xf]
        %v523 = vld [vmem:[%s5 + $0x1c] sm:$0xf]
        %v524 = vld [vmem:[%s5 + $0x20] sm:$0xf]
        %v525 = vld [vmem:[%s5 + $0x24] sm:$0xf]
        %v526 = vld [vmem:[%s5 + $0x28] sm:$0xf]
        %v527 = vld [vmem:[%s5 + $0x2c] sm:$0xf]
        %v528 = vld [vmem:[%s5 + $0x30] sm:$0xf]
        %v529 = vld [vmem:[%s5 + $0x34] sm:$0xf]
        %v530 = vld [vmem:[%s5 + $0x38] sm:$0xf]
        %v531 = vld [vmem:[%s5 + $0x3c] sm:$0xf]
        %v533 = vlaneseq
        %v534 = vshrl.u32 %v533, 7
        %v535 = vsub.s32 0, %v534
        %v536 = vrot.slane %v514, %v535
        %v554 = vunpack.c.l.b16 %v516
        %v555 = vunpack.c.l.b16 %v517
        %v556 = vunpack.c.l.b16 %v518
        %v557 = vunpack.c.l.b16 %v519
        %v558 = vunpack.c.l.b16 %v520
        %v559 = vunpack.c.l.b16 %v521
        %v560 = vunpack.c.l.b16 %v522
        %v561 = vunpack.c.l.b16 %v523
        %v562 = vunpack.c.l.b16 %v524
        %v563 = vunpack.c.l.b16 %v525
        %v564 = vunpack.c.l.b16 %v526
        %v565 = vunpack.c.l.b16 %v527
        %v566 = vunpack.c.l.b16 %v528
        %v567 = vunpack.c.l.b16 %v529
        %v568 = vunpack.c.l.b16 %v530
        %v569 = vunpack.c.l.b16 %v531
        %v570 = vpack.c.b16 %v555, %v554
        %v571 = vpack.c.b16 %v557, %v556
        %v572 = vpack.c.b16 %v559, %v558
        %v573 = vpack.c.b16 %v561, %v560
        %v574 = vpack.c.b16 %v563, %v562
        %v575 = vpack.c.b16 %v565, %v564
        %v576 = vpack.c.b16 %v567, %v566
        %v577 = vpack.c.b16 %v569, %v568
        %586 = vmatprep.subr.bf16.mxu0 0
        %587 = vmatpush1.bf16.msra.mxu0 %v570
        %588 = vmatprep.subr.bf16.mxu0 0
        %589 = vmatpush1.bf16.msra.mxu0 %v571
        %590 = vmatprep.subr.bf16.mxu0 0
        %591 = vmatpush1.bf16.msra.mxu0 %v572
        %592 = vmatprep.subr.bf16.mxu0 0
        %593 = vmatpush1.bf16.msra.mxu0 %v573
        %594 = vmatprep.subr.bf16.mxu0 0
        %595 = vmatpush1.bf16.msra.mxu0 %v574
        %596 = vmatprep.subr.bf16.mxu0 0
        %597 = vmatpush1.bf16.msra.mxu0 %v575
        %598 = vmatprep.subr.bf16.mxu0 0
        %599 = vmatpush1.bf16.msra.mxu0 %v576
        %600 = vmatprep.subr.bf16.mxu0 0
        %601 = vmatpush1.bf16.msra.mxu0 %v577
        %602 = vmatprep.subr.bf16.mxu0 0
        %603 = vmatpush1.bf16.msra.mxu0 0
        %604 = vmatprep.subr.bf16.mxu0 0
        %605 = vmatpush1.bf16.msra.mxu0 0
        %606 = vmatprep.subr.bf16.mxu0 0
        %607 = vmatpush1.bf16.msra.mxu0 0
        %608 = vmatprep.subr.bf16.mxu0 0
        %609 = vmatpush1.bf16.msra.mxu0 0
        %610 = vmatprep.subr.bf16.mxu0 0
        %611 = vmatpush1.bf16.msra.mxu0 0
        %612 = vmatprep.subr.bf16.mxu0 0
        %613 = vmatpush1.bf16.msra.mxu0 0
        %614 = vmatprep.subr.bf16.mxu0 0
        %615 = vmatpush1.bf16.msra.mxu0 0
        %616 = vmatprep.subr.bf16.mxu0 0
        %617 = vmatpush1.bf16.msra.mxu0 0
        %618 = vmatprep.mubr.bf16.mxu0 0
        %619 = vmatmul.mubr.bf16.gmra.mrb[0].mxu0 %v515
        %v620 = vpop.f32.mrb[0].mxu0
        %v621 = vadd.f32 %v536, %v620
        %v622 = vpop.f32.mrb[0].mxu0
        %v623 = vpop.f32.mrb[0].mxu0
        %v624 = vadd.f32 %v536, %v623
        %v625 = vpop.f32.mrb[0].mxu0
        %626 = vdwg.mxu0
        %v627 = vmax.f32 %v621, 0.0
        %v628 = vmax.f32 %v624, 0.0
        %v629 = vld [vmem:[%s378] sm:$0xf]
        %v630 = vld [vmem:[%s378 + $0x4] sm:$0xf]
        %v633 = vunpack.c.l.b16 %v629
        %v634 = vunpack.c.l.b16 %v630
        %v635 = vpack.c.b16 %v634, %v633
        %637 = vmatprep.subr.bf16.mxu0 0
        %638 = vmatpush1.bf16.msra.mxu0 %v570
        %639 = vmatprep.subr.bf16.mxu0 0
        %640 = vmatpush1.bf16.msra.mxu0 %v571
        %641 = vmatprep.subr.bf16.mxu0 0
        %642 = vmatpush1.bf16.msra.mxu0 %v572
        %643 = vmatprep.subr.bf16.mxu0 0
        %644 = vmatpush1.bf16.msra.mxu0 %v573
        %645 = vmatprep.subr.bf16.mxu0 0
        %646 = vmatpush1.bf16.msra.mxu0 %v574
        %647 = vmatprep.subr.bf16.mxu0 0
        %648 = vmatpush1.bf16.msra.mxu0 %v575
        %649 = vmatprep.subr.bf16.mxu0 0
        %650 = vmatpush1.bf16.msra.mxu0 %v576
        %651 = vmatprep.subr.bf16.mxu0 0
        %652 = vmatpush1.bf16.msra.mxu0 %v577
        %653 = vmatprep.subr.bf16.mxu0 0
        %654 = vmatpush1.bf16.msra.mxu0 0
        %655 = vmatprep.subr.bf16.mxu0 0
        %656 = vmatpush1.bf16.msra.mxu0 0
        %657 = vmatprep.subr.bf16.mxu0 0
        %658 = vmatpush1.bf16.msra.mxu0 0
        %659 = vmatprep.subr.bf16.mxu0 0
        %660 = vmatpush1.bf16.msra.mxu0 0
        %661 = vmatprep.subr.bf16.mxu0 0
        %662 = vmatpush1.bf16.msra.mxu0 0
        %663 = vmatprep.subr.bf16.mxu0 0
        %664 = vmatpush1.bf16.msra.mxu0 0
        %665 = vmatprep.subr.bf16.mxu0 0
        %666 = vmatpush1.bf16.msra.mxu0 0
        %667 = vmatprep.subr.bf16.mxu0 0
        %668 = vmatpush1.bf16.msra.mxu0 0
        %669 = vmatprep.mubr.bf16.mxu0 0
        %670 = vmatmul.mubr.bf16.gmra.mrb[0].mxu0 %v635
        %v671 = vpop.f32.mrb[0].mxu0
        %v672 = vadd.f32 %v536, %v671
        %v673 = vpop.f32.mrb[0].mxu0
        %v674 = vpop.f32.mrb[0].mxu0
        %v675 = vadd.f32 %v536, %v674
        %v676 = vpop.f32.mrb[0].mxu0
        %677 = vdwg.mxu0
        %v678 = vmax.f32 %v672, 0.0
        %v679 = vmax.f32 %v675, 0.0
        %v680 = vld [vmem:[%s7] sm:$0x1]
        %v682 = vlaneseq
        %v683 = vshrl.u32 %v682, 7
        %v684 = vsub.s32 0, %v683
        %v685 = vrot.slane %v680, %v684
        %v687 = vmul.f32 %v627, %v685
        %v688 = vmul.f32 %v628, %v685
        %vm689 = vcmask 523264
        %v690 = vsel %vm689, %v687, 0.0
        %691 = vadd.xlane.f32.xlu0 %v690
        %v692 = vpop.xlane.xlu0 %691
        %v693 = vsel %vm689, %v688, 0.0
        %694 = vadd.xlane.f32.xlu0 %v693
        %v695 = vpop.xlane.xlu0 %694
        %v696 = vmul.f32 %v678, %v685
        %v697 = vmul.f32 %v679, %v685
        %v698 = vsel %vm689, %v696, 0.0
        %699 = vadd.xlane.f32.xlu0 %v698
        %v700 = vpop.xlane.xlu0 %699
        %v701 = vsel %vm689, %v697, 0.0
        %702 = vadd.xlane.f32.xlu0 %v701
        %v703 = vpop.xlane.xlu0 %702
        %v706 = vlaneseq
        %v707 = vand.u32 %v706, 127
        %v708 = vlaneseq
        %v709 = vshrl.u32 %v708, 7
        %v710 = vsub.s32 %v707, %v709
        %v711 = vrot.slane %v692, %v710
        %v712 = vlaneseq
        %v713 = vshrl.u32 %v712, 7
        %v714 = vsub.s32 %v707, %v713
        %v715 = vrot.slane %v695, %v714
        %vm716 = vcmask 1041409
        %v717 = vsel %vm716, %v715, %v711
        %v721 = vadd.s32 %v707, 4294967288
        %v722 = vlaneseq
        %v723 = vshrl.u32 %v722, 7
        %v724 = vsub.s32 %v721, %v723
        %v725 = vrot.slane %v700, %v724
        %v726 = vlaneseq
        %v727 = vshrl.u32 %v726, 7
        %v728 = vsub.s32 %v721, %v727
        %v729 = vrot.slane %v703, %v728
        %v730 = vsel %vm716, %v729, %v725
        %vm732 = vcmask 64512
        %v733 = vsel %vm732, %v717, %v730
        %v734 = vld [vmem:[%s383] sm:$0x1]
        %v735 = vld [vmem:[%s383 + $0x1] sm:$0x1]
        %v738 = vcombine.low %v734, %v735
        %v740 = vunpack.c.l.s4 1966171168
        %v741 = vunpack.c.0.s8 %v740
        %v742 = vlaneseq
        %v743 = vshrl.u32 %v742, 7
        %v744 = vsub.s32 %v741, %v743
        %v745 = vrot.slane %v738, %v744
        %v747 = vunpack.c.l.s4 1966171168
        %v748 = vunpack.c.0.s8 %v747
        %v749 = vlaneseq
        %v750 = vshrl.u32 %v749, 7
        %v751 = vsub.s32 %v748, %v750
        %v752 = vrot.slane %v745, %v751
        %v754 = vadd.f32 %v733, %v752
        %vm755 = vcmask 123904
        %v756 = vsel %vm755, %v754, -inf
        %757 = vmax.xlane.f32.xlu0 %v756
        %v758 = vpop.xlane.xlu0 %757
        %v759 = vsub.f32 %v754, %v758
        %v760 = vmul.f32 %v759, 1.442695
        %v761 = vpow.pop %v760
        %v762 = vsel %vm755, %v761, 0.0
        %763 = vadd.xlane.f32.xlu0 %v762
        %v764 = vpop.xlane.xlu0 %763
        %v765 = vrcp.pop %v764
        %v766 = vmul.f32 %v761, %v765
        %v767 = vlaneseq
        %v768 = vshrl.u32 %v767, 7
        %v769 = vsub.s32 0, %v768
        %v770 = vrot.slane %v766, %v769
        %772 = vbcast.lane.b32.xlu0 %v770, 256
        %v773 = vpop.permute.xlu0 %772
        %v774 = vlaneseq
        %v775 = vshrl.u32 %v774, 7
        %v776 = vsub.s32 1, %v775
        %v777 = vrot.slane %v766, %v776
        %779 = vbcast.lane.b32.xlu0 %v777, 256
        %v780 = vpop.permute.xlu0 %779
        %v781 = vmul.f32 %v773, %v508
        %v782 = vmul.f32 %v780, %v509
        %v783 = vrot.slane %v781, 4
        %v784 = vadd.f32 %v781, %v783
        %v785 = vrot.slane %v784, 2
        %v786 = vadd.f32 %v784, %v785
        %v787 = vrot.slane %v786, 1
        %v788 = vadd.f32 %v786, %v787
        %v789 = vrot.slane %v782, 4
        %v790 = vadd.f32 %v782, %v789
        %v791 = vrot.slane %v790, 2
        %v792 = vadd.f32 %v790, %v791
        %v793 = vrot.slane %v792, 1
        %v794 = vadd.f32 %v792, %v793
        %s796 = sor.u32 256, 8
        %797 = vbcast.lane.b32.xlu0 %v770, %s796
        %v798 = vpop.permute.xlu0 %797
        %s800 = sor.u32 256, 8
        %801 = vbcast.lane.b32.xlu0 %v777, %s800
        %v802 = vpop.permute.xlu0 %801
        %v803 = vunpack.c.l.bf16 %v629
        %v804 = vunpack.c.l.bf16 %v630
        %v805 = vmul.f32 %v798, %v803
        %v806 = vmul.f32 %v802, %v804
        %v807 = vrot.slane %v805, 4
        %v808 = vadd.f32 %v805, %v807
        %v809 = vrot.slane %v808, 2
        %v810 = vadd.f32 %v808, %v809
        %v811 = vrot.slane %v810, 1
        %v812 = vadd.f32 %v810, %v811
        %v813 = vrot.slane %v806, 4
        %v814 = vadd.f32 %v806, %v813
        %v815 = vrot.slane %v814, 2
        %v816 = vadd.f32 %v814, %v815
        %v817 = vrot.slane %v816, 1
        %v818 = vadd.f32 %v816, %v817
        %v819 = vadd.f32 %v788, %v812
        %v820 = vadd.f32 %v794, %v818
        %821 = vst [vmem:[%s360] sm:$0x1] %v819
        %822 = vst [vmem:[%s360 + $0x1] sm:$0x1] %v820
        %s823 = sand.u32 %s218, 1
        %s824 = scalar_lea.sflag [#allocation3], %s823
        %s825 = sand.u32 %s218, 1
        %s826 = smul.addr %s825, 2
        %s827 = scalar_lea.vmem [#allocation2], %s826
        %s828 = sand.u32 %s244, 1
        %s829 = scalar_lea.sflag [#allocation5], %s828
        %s830 = sand.u32 %s244, 1
        %s831 = smul.addr %s830, 8
        %s832 = scalar_lea.vmem [#allocation4], %s831
        // Predicated region
        $region53: #{tpu_custom_call.1} parent=51 // pred_check
          %p833 = pneg %p228
        $region54: #{tpu_custom_call.1} parent=51 // pred_check_branch
          %835 = sbr.rel (%p833) target = $region56
        $region55: #{tpu_custom_call.1} parent=51 // pred_region
          %s836 = smul.u32 2, %s27
          %s838 = ssub.s32 32, 32
          %839 = vsyncadd %s824, %s838
          %s840 = smul.addr %s836, 16
          %s841 = scalar_lea.hbm %s8, %s840
          %s842 = sshll.u32 %s827, 4
          %s843 = int_to_ptr.vmem [resolvable:$true] %s842
          %848 = dma.vmem_to_hbm [thread:$0]  %s843, 32, %s841, %s824, 16, 16, 1
        $region56: #{tpu_custom_call.1} parent=51 // pred_fallthru
          _
        // Predicated region
        $region57: #{tpu_custom_call.1} parent=51 // pred_check
          %p849 = pneg %p254
        $region58: #{tpu_custom_call.1} parent=51 // pred_check_branch
          %851 = sbr.rel (%p849) target = $region60
        $region59: #{tpu_custom_call.1} parent=51 // pred_region
          %s852 = smul.u32 2, %s27
          %s854 = ssub.s32 128, 128
          %855 = vsyncadd %s829, %s854
          %s856 = smul.addr %s852, 64
          %s857 = scalar_lea.hbm %s9, %s856
          %s858 = sshll.u32 %s832, 4
          %s859 = int_to_ptr.vmem [resolvable:$true] %s858
          %864 = dma.vmem_to_hbm [thread:$0]  %s859, 128, %s857, %s829, 64, 64, 4
        $region60: #{tpu_custom_call.1} parent=51 // pred_fallthru
          _
      $region52: #{tpu_custom_call.1} parent=5 // pred_fallthru
        _
      %p865 = scmp.le.s32.totalorder 2, %s22
      // Predicated region
      $region61: #{tpu_custom_call.1} parent=5 // pred_check
        %p866 = pneg %p865
      $region62: #{tpu_custom_call.1} parent=5 // pred_check_branch
        %868 = sbr.rel (%p866) target = $region64
      $region63: #{tpu_custom_call.1} parent=5 // pred_region
        %s869 = ssub.s32 %s22, 2
        // Predicated region
        $region65: #{tpu_custom_call.1} parent=63 // pred_check
          %p870 = pneg %p234
        $region66: #{tpu_custom_call.1} parent=63 // pred_check_branch
          %872 = sbr.rel (%p870) target = $region68
        $region67: #{tpu_custom_call.1} parent=63 // pred_region
          %s873 = sand.u32 %s219, 1
          %s874 = scalar_lea.sflag [#allocation3], %s873
          %s875 = sand.u32 %s219, 1
          %s876 = smul.addr %s875, 2
          %s877 = scalar_lea.vmem [#allocation2], %s876
          %878 = dma.done %s874, 32
        $region68: #{tpu_custom_call.1} parent=63 // pred_fallthru
          _
        // Predicated region
        $region69: #{tpu_custom_call.1} parent=63 // pred_check
          %p879 = pneg %p260
        $region70: #{tpu_custom_call.1} parent=63 // pred_check_branch
          %881 = sbr.rel (%p879) target = $region72
        $region71: #{tpu_custom_call.1} parent=63 // pred_region
          %s882 = sand.u32 %s245, 1
          %s883 = scalar_lea.sflag [#allocation5], %s882
          %s884 = sand.u32 %s245, 1
          %s885 = smul.addr %s884, 8
          %s886 = scalar_lea.vmem [#allocation4], %s885
          %887 = dma.done %s883, 128
        $region72: #{tpu_custom_call.1} parent=63 // pred_fallthru
          _
      $region64: #{tpu_custom_call.1} parent=5 // pred_fallthru
        _
    $region6: #{tpu_custom_call.1} parent=1 // loop_footer
      %s26 = sadd.s32 1, %s22
    $region7: #{tpu_custom_call.1} parent=1 // loop_footer_branch
      %21 = sbr.rel target = $region3
    $region8: #{tpu_custom_call.1} parent=1 // loop_exit
      _
    %888 = vsyncpa [#allocation3], 1
    %s889 = scalar_lea.sflag [#allocation3], 1
    %890 = vsyncpa %s889, 1
    %891 = vsyncpa [#allocation5], 1
    %s892 = scalar_lea.sflag [#allocation5], 1
    %893 = vsyncpa %s892, 1

// kernel: tpu_custom_call.1
$region0: #{tpu_custom_call.1}
  #allocation0 [shape = 'u32[]', space=smem, size = 0x4, offset = 0x4, fixed_abs, tag = 'smem constant byte address 0x4 - core index']
  #allocation1 [shape = 'u32[144,128]{1,0:T(1,128)}', space=vmem, size = 0x12000, scoped, tag = 'internal scratch']
  %s0 = inlined_call_operand.vmem [shape: bf16[4,8,128], index: 0, kind: input, shape index: {}]
  %s1 = inlined_call_operand.vmem [shape: bf16[4,8,128], index: 1, kind: input, shape index: {}]
  %s2 = inlined_call_operand.vmem [shape: f32[4,1,16], index: 2, kind: input, shape index: {}]
  %s3 = inlined_call_operand.vmem [shape: bf16[128,128], index: 3, kind: input, shape index: {}]
  %s4 = inlined_call_operand.vmem [shape: f32[1,128], index: 4, kind: input, shape index: {}]
  %s5 = inlined_call_operand.vmem [shape: bf16[128,64], index: 5, kind: input, shape index: {}]
  %s6 = inlined_call_operand.vmem [shape: f32[1,64], index: 6, kind: input, shape index: {}]
  %s7 = inlined_call_operand.vmem [shape: f32[1,64], index: 7, kind: input, shape index: {}]
  %s8 = inlined_call_operand.hbm [shape: f32[4,1,128], index: 8, kind: output, shape index: {0}]
  %s9 = inlined_call_operand.hbm [shape: bf16[4,8,128], index: 9, kind: output, shape index: {1}]
  %10 = xla_tuple %s8, %s9
  %s11 = sld [smem:[#allocation0]]
  $region73: #{tpu_custom_call.1} parent=0
    _
  %s13 = ssub.s32 1, %s11
  %s14 = scalar_select 0, %s13, %s11
  $region1: #{tpu_custom_call.1} parent=0
    #allocation2 [shape = 'u8[2048]{0}', space=vmem, size = 0x800, scoped, tag = 'output window, operand 0']
    #allocation3 [shape = 's32[2]{0}', space=sflag, size = 0x8, scoped, tag = 'scoped memory for tpu_custom_call.1']
    #allocation4 [shape = 'u8[8192]{0}', space=vmem, size = 0x2000, scoped, tag = 'output window, operand 1']
    #allocation5 [shape = 's32[2]{0}', space=sflag, size = 0x8, scoped, tag = 'scoped memory for tpu_custom_call.1']
    %15 = vsyncpa [#allocation3], 0
    %s16 = scalar_lea.sflag [#allocation3], 1
    %17 = vsyncpa %s16, 0
    %18 = vsyncpa [#allocation5], 0
    %s19 = scalar_lea.sflag [#allocation5], 1
    %20 = vsyncpa %s19, 0
    loop: start=0, step=1, limit=4
    $region2: #{tpu_custom_call.1} parent=1 // loop_pre_header
      _
    $region3: #{tpu_custom_call.1} parent=1 // loop_header
      %s22 = sphi 0, %s26
      %p23 = scmp.ge.s32.totalorder %s22, 4
      %s32 = sphi 0, %s34
      %s35 = sphi 0, %s32
      %s36 = sphi 0, %s35
      %s52 = sphi 0, %s36
      %s58 = sphi 0, %s60
      %s61 = sphi 0, %s58
      %s62 = sphi 0, %s61
      %s78 = sphi 0, %s62
      %s84 = sphi 0, %s86
      %s87 = sphi 0, %s84
      %s88 = sphi 0, %s87
      %s104 = sphi 0, %s88
      %s108 = sphi 0, %s108
      %s110 = sphi 0, %s108
      %s111 = sphi 0, %s110
      %s125 = sphi 0, %s111
      %s129 = sphi 0, %s129
      %s131 = sphi 0, %s129
      %s132 = sphi 0, %s131
      %s146 = sphi 0, %s132
      %s150 = sphi 0, %s150
      %s152 = sphi 0, %s150
      %s153 = sphi 0, %s152
      %s167 = sphi 0, %s153
      %s171 = sphi 0, %s171
      %s173 = sphi 0, %s171
      %s174 = sphi 0, %s173
      %s188 = sphi 0, %s174
      %s192 = sphi 0, %s192
      %s194 = sphi 0, %s192
      %s195 = sphi 0, %s194
      %s209 = sphi 0, %s195
      %s215 = sphi 0, %s217
      %s218 = sphi 0, %s215
      %s219 = sphi 0, %s218
      %s235 = sphi 0, %s219
      %s241 = sphi 0, %s243
      %s244 = sphi 0, %s241
      %s245 = sphi 0, %s244
      %s261 = sphi 0, %s245
    $region4: #{tpu_custom_call.1} parent=1 // loop_header_branch
      %25 = sbr.rel (%p23) target = $region8
    $region5: #{tpu_custom_call.1} parent=1 // loop_body
      %s27 = ssub.s32 %s22, 1
      %s28 = ssub.s32 %s22, 2
      %s29 = sadd.s32 %s22, 1
      %s30 = ssub.s32 %s22, %s29
      %p31 = scmp.eq.s32.totalorder %s30, 0
      %s33 = sadd.s32 %s32, 1
      %s34 = scalar_select %p31, %s32, %s33
      %p37 = pneg %p31
      %p38 = scmp.eq.s32.totalorder %s22, 1
      %p39 = por %p37, %p38
      %p40 = scmp.ne.s32.totalorder %s32, %s35
      %p41 = scmp.eq.s32.totalorder %s22, 0
      %p42 = por %p40, %p41
      %p43 = scmp.ne.s32.totalorder %s32, %s35
      %p44 = scmp.eq.s32.totalorder %s27, 1
      %p45 = por %p43, %p44
      %p46 = scmp.ne.s32.totalorder %s35, %s36
      %p47 = scmp.eq.s32.totalorder %s27, 0
      %p48 = por %p46, %p47
      %p49 = scmp.ne.s32.totalorder %s35, %s36
      %p50 = scmp.eq.s32.totalorder %s28, 1
      %p51 = por %p49, %p50
      %p53 = scmp.ne.s32.totalorder %s36, %s52
      %p54 = scmp.eq.s32.totalorder %s28, 0
      %p55 = por %p53, %p54
      %s56 = ssub.s32 %s22, %s29
      %p57 = scmp.eq.s32.totalorder %s56, 0
      %s59 = sadd.s32 %s58, 1
      %s60 = scalar_select %p57, %s58, %s59
      %p63 = pneg %p57
      %p64 = scmp.eq.s32.totalorder %s22, 1
      %p65 = por %p63, %p64
      %p66 = scmp.ne.s32.totalorder %s58, %s61
      %p67 = scmp.eq.s32.totalorder %s22, 0
      %p68 = por %p66, %p67
      %p69 = scmp.ne.s32.totalorder %s58, %s61
      %p70 = scmp.eq.s32.totalorder %s27, 1
      %p71 = por %p69, %p70
      %p72 = scmp.ne.s32.totalorder %s61, %s62
      %p73 = scmp.eq.s32.totalorder %s27, 0
      %p74 = por %p72, %p73
      %p75 = scmp.ne.s32.totalorder %s61, %s62
      %p76 = scmp.eq.s32.totalorder %s28, 1
      %p77 = por %p75, %p76
      %p79 = scmp.ne.s32.totalorder %s62, %s78
      %p80 = scmp.eq.s32.totalorder %s28, 0
      %p81 = por %p79, %p80
      %s82 = ssub.s32 %s22, %s29
      %p83 = scmp.eq.s32.totalorder %s82, 0
      %s85 = sadd.s32 %s84, 1
      %s86 = scalar_select %p83, %s84, %s85
      %p89 = pneg %p83
      %p90 = scmp.eq.s32.totalorder %s22, 1
      %p91 = por %p89, %p90
      %p92 = scmp.ne.s32.totalorder %s84, %s87
      %p93 = scmp.eq.s32.totalorder %s22, 0
      %p94 = por %p92, %p93
      %p95 = scmp.ne.s32.totalorder %s84, %s87
      %p96 = scmp.eq.s32.totalorder %s27, 1
      %p97 = por %p95, %p96
      %p98 = scmp.ne.s32.totalorder %s87, %s88
      %p99 = scmp.eq.s32.totalorder %s27, 0
      %p100 = por %p98, %p99
      %p101 = scmp.ne.s32.totalorder %s87, %s88
      %p102 = scmp.eq.s32.totalorder %s28, 1
      %p103 = por %p101, %p102
      %p105 = scmp.ne.s32.totalorder %s88, %s104
      %p106 = scmp.eq.s32.totalorder %s28, 0
      %p107 = por %p105, %p106
      %s109 = sadd.s32 %s108, 1
      %p112 = scmp.eq.s32.totalorder %s22, 1
      %p113 = scmp.ne.s32.totalorder %s108, %s110
      %p114 = scmp.eq.s32.totalorder %s22, 0
      %p115 = por %p113, %p114
      %p116 = scmp.ne.s32.totalorder %s108, %s110
      %p117 = scmp.eq.s32.totalorder %s27, 1
      %p118 = por %p116, %p117
      %p119 = scmp.ne.s32.totalorder %s110, %s111
      %p120 = scmp.eq.s32.totalorder %s27, 0
      %p121 = por %p119, %p120
      %p122 = scmp.ne.s32.totalorder %s110, %s111
      %p123 = scmp.eq.s32.totalorder %s28, 1
      %p124 = por %p122, %p123
      %p126 = scmp.ne.s32.totalorder %s111, %s125
      %p127 = scmp.eq.s32.totalorder %s28, 0
      %p128 = por %p126, %p127
      %s130 = sadd.s32 %s129, 1
      %p133 = scmp.eq.s32.totalorder %s22, 1
      %p134 = scmp.ne.s32.totalorder %s129, %s131
      %p135 = scmp.eq.s32.totalorder %s22, 0
      %p136 = por %p134, %p135
      %p137 = scmp.ne.s32.totalorder %s129, %s131
      %p138 = scmp.eq.s32.totalorder %s27, 1
      %p139 = por %p137, %p138
      %p140 = scmp.ne.s32.totalorder %s131, %s132
      %p141 = scmp.eq.s32.totalorder %s27, 0
      %p142 = por %p140, %p141
      %p143 = scmp.ne.s32.totalorder %s131, %s132
      %p144 = scmp.eq.s32.totalorder %s28, 1
      %p145 = por %p143, %p144
      %p147 = scmp.ne.s32.totalorder %s132, %s146
      %p148 = scmp.eq.s32.totalorder %s28, 0
      %p149 = por %p147, %p148
      %s151 = sadd.s32 %s150, 1
      %p154 = scmp.eq.s32.totalorder %s22, 1
      %p155 = scmp.ne.s32.totalorder %s150, %s152
      %p156 = scmp.eq.s32.totalorder %s22, 0
      %p157 = por %p155, %p156
      %p158 = scmp.ne.s32.totalorder %s150, %s152
      %p159 = scmp.eq.s32.totalorder %s27, 1
      %p160 = por %p158, %p159
      %p161 = scmp.ne.s32.totalorder %s152, %s153
      %p162 = scmp.eq.s32.totalorder %s27, 0
      %p163 = por %p161, %p162
      %p164 = scmp.ne.s32.totalorder %s152, %s153
      %p165 = scmp.eq.s32.totalorder %s28, 1
      %p166 = por %p164, %p165
      %p168 = scmp.ne.s32.totalorder %s153, %s167
      %p169 = scmp.eq.s32.totalorder %s28, 0
      %p170 = por %p168, %p169
      %s172 = sadd.s32 %s171, 1
      %p175 = scmp.eq.s32.totalorder %s22, 1
      %p176 = scmp.ne.s32.totalorder %s171, %s173
      %p177 = scmp.eq.s32.totalorder %s22, 0
      %p178 = por %p176, %p177
      %p179 = scmp.ne.s32.totalorder %s171, %s173
      %p180 = scmp.eq.s32.totalorder %s27, 1
      %p181 = por %p179, %p180
      %p182 = scmp.ne.s32.totalorder %s173, %s174
      %p183 = scmp.eq.s32.totalorder %s27, 0
      %p184 = por %p182, %p183
      %p185 = scmp.ne.s32.totalorder %s173, %s174
      %p186 = scmp.eq.s32.totalorder %s28, 1
      %p187 = por %p185, %p186
      %p189 = scmp.ne.s32.totalorder %s174, %s188
      %p190 = scmp.eq.s32.totalorder %s28, 0
      %p191 = por %p189, %p190
      %s193 = sadd.s32 %s192, 1
      %p196 = scmp.eq.s32.totalorder %s22, 1
      %p197 = scmp.ne.s32.totalorder %s192, %s194
      %p198 = scmp.eq.s32.totalorder %s22, 0
      %p199 = por %p197, %p198
      %p200 = scmp.ne.s32.totalorder %s192, %s194
      %p201 = scmp.eq.s32.totalorder %s27, 1
      %p202 = por %p200, %p201
      %p203 = scmp.ne.s32.totalorder %s194, %s195
      %p204 = scmp.eq.s32.totalorder %s27, 0
      %p205 = por %p203, %p204
      %p206 = scmp.ne.s32.totalorder %s194, %s195
      %p207 = scmp.eq.s32.totalorder %s28, 1
      %p208 = por %p206, %p207
      %p210 = scmp.ne.s32.totalorder %s195, %s209
      %p211 = scmp.eq.s32.totalorder %s28, 0
      %p212 = por %p210, %p211
      %s213 = ssub.s32 %s22, %s29
      %p214 = scmp.eq.s32.totalorder %s213, 0
      %s216 = sadd.s32 %s215, 1
      %s217 = scalar_select %p214, %s215, %s216
      %p220 = pneg %p214
      %p221 = scmp.eq.s32.totalorder %s22, 1
      %p222 = por %p220, %p221
      %p223 = scmp.ne.s32.totalorder %s215, %s218
      %p224 = scmp.eq.s32.totalorder %s22, 0
      %p225 = por %p223, %p224
      %p226 = scmp.ne.s32.totalorder %s215, %s218
      %p227 = scmp.eq.s32.totalorder %s27, 1
      %p228 = por %p226, %p227
      %p229 = scmp.ne.s32.totalorder %s218, %s219
      %p230 = scmp.eq.s32.totalorder %s27, 0
      %p231 = por %p229, %p230
      %p232 = scmp.ne.s32.totalorder %s218, %s219
      %p233 = scmp.eq.s32.totalorder %s28, 1
      %p234 = por %p232, %p233
      %p236 = scmp.ne.s32.totalorder %s219, %s235
      %p237 = scmp.eq.s32.totalorder %s28, 0
      %p238 = por %p236, %p237
      %s239 = ssub.s32 %s22, %s29
      %p240 = scmp.eq.s32.totalorder %s239, 0
      %s242 = sadd.s32 %s241, 1
      %s243 = scalar_select %p240, %s241, %s242
      %p246 = pneg %p240
      %p247 = scmp.eq.s32.totalorder %s22, 1
      %p248 = por %p246, %p247
      %p249 = scmp.ne.s32.totalorder %s241, %s244
      %p250 = scmp.eq.s32.totalorder %s22, 0
      %p251 = por %p249, %p250
      %p252 = scmp.ne.s32.totalorder %s241, %s244
      %p253 = scmp.eq.s32.totalorder %s27, 1
      %p254 = por %p252, %p253
      %p255 = scmp.ne.s32.totalorder %s244, %s245
      %p256 = scmp.eq.s32.totalorder %s27, 0
      %p257 = por %p255, %p256
      %p258 = scmp.ne.s32.totalorder %s244, %s245
      %p259 = scmp.eq.s32.totalorder %s28, 1
      %p260 = por %p258, %p259
      %p262 = scmp.ne.s32.totalorder %s245, %s261
      %p263 = scmp.eq.s32.totalorder %s28, 0
      %p264 = por %p262, %p263
      %p265 = scmp.le.s32.totalorder 1, %s22
      %p266 = scmp.lt.s32.totalorder %s22, 3
      %p267 = pnand %p265, %p266
      %p268 = pneg %p267
      // Predicated region
      $region9: #{tpu_custom_call.1} parent=5 // pred_check
        _
      $region10: #{tpu_custom_call.1} parent=5 // pred_check_branch
        %270 = sbr.rel (%p267) target = $region12
      $region11: #{tpu_custom_call.1} parent=5 // pred_region
        %s271 = ssub.s32 %s22, 1
        // Predicated region
        $region13: #{tpu_custom_call.1} parent=11 // pred_check
          %p272 = pneg %p121
        $region14: #{tpu_custom_call.1} parent=11 // pred_check_branch
          %274 = sbr.rel (%p272) target = $region16
        $region15: #{tpu_custom_call.1} parent=11 // pred_region
          _
        $region16: #{tpu_custom_call.1} parent=11 // pred_fallthru
          _
        // Predicated region
        $region17: #{tpu_custom_call.1} parent=11 // pred_check
          %p275 = pneg %p142
        $region18: #{tpu_custom_call.1} parent=11 // pred_check_branch
          %277 = sbr.rel (%p275) target = $region20
        $region19: #{tpu_custom_call.1} parent=11 // pred_region
          _
        $region20: #{tpu_custom_call.1} parent=11 // pred_fallthru
          _
        // Predicated region
        $region21: #{tpu_custom_call.1} parent=11 // pred_check
          %p278 = pneg %p163
        $region22: #{tpu_custom_call.1} parent=11 // pred_check_branch
          %280 = sbr.rel (%p278) target = $region24
        $region23: #{tpu_custom_call.1} parent=11 // pred_region
          _
        $region24: #{tpu_custom_call.1} parent=11 // pred_fallthru
          _
        // Predicated region
        $region25: #{tpu_custom_call.1} parent=11 // pred_check
          %p281 = pneg %p184
        $region26: #{tpu_custom_call.1} parent=11 // pred_check_branch
          %283 = sbr.rel (%p281) target = $region28
        $region27: #{tpu_custom_call.1} parent=11 // pred_region
          _
        $region28: #{tpu_custom_call.1} parent=11 // pred_fallthru
          _
        // Predicated region
        $region29: #{tpu_custom_call.1} parent=11 // pred_check
          %p284 = pneg %p205
        $region30: #{tpu_custom_call.1} parent=11 // pred_check_branch
          %286 = sbr.rel (%p284) target = $region32
        $region31: #{tpu_custom_call.1} parent=11 // pred_region
          _
        $region32: #{tpu_custom_call.1} parent=11 // pred_fallthru
          _
      $region12: #{tpu_custom_call.1} parent=5 // pred_fallthru
        _
      %p287 = scmp.lt.s32.totalorder %s22, 2
      // Predicated region
      $region33: #{tpu_custom_call.1} parent=5 // pred_check
        %p288 = pneg %p287
      $region34: #{tpu_custom_call.1} parent=5 // pred_check_branch
        %290 = sbr.rel (%p288) target = $region36
      $region35: #{tpu_custom_call.1} parent=5 // pred_region
        // Predicated region
        $region37: #{tpu_custom_call.1} parent=35 // pred_check
          %p291 = pneg %p42
        $region38: #{tpu_custom_call.1} parent=35 // pred_check_branch
          %293 = sbr.rel (%p291) target = $region40
        $region39: #{tpu_custom_call.1} parent=35 // pred_region
          %s294 = smul.u32 2, %s22
          %p295 = scmp.lt.s32.totalorder %s294, 3
          %s296 = scalar_select %p295, %s294, 3
          %s297 = smul.addr %s296, 4
          %s298 = scalar_lea.vmem %s0, %s297
          %s299 = smul.u32 2, %s22
        $region40: #{tpu_custom_call.1} parent=35 // pred_fallthru
          _
        // Predicated region
        $region41: #{tpu_custom_call.1} parent=35 // pred_check
          %p300 = pneg %p68
        $region42: #{tpu_custom_call.1} parent=35 // pred_check_branch
          %302 = sbr.rel (%p300) target = $region44
        $region43: #{tpu_custom_call.1} parent=35 // pred_region
          %s303 = smul.u32 2, %s22
          %p304 = scmp.lt.s32.totalorder %s303, 3
          %s305 = scalar_select %p304, %s303, 3
          %s306 = smul.addr %s305, 4
          %s307 = scalar_lea.vmem %s1, %s306
          %s308 = smul.u32 2, %s22
        $region44: #{tpu_custom_call.1} parent=35 // pred_fallthru
          _
        // Predicated region
        $region45: #{tpu_custom_call.1} parent=35 // pred_check
          %p309 = pneg %p94
        $region46: #{tpu_custom_call.1} parent=35 // pred_check_branch
          %311 = sbr.rel (%p309) target = $region48
        $region47: #{tpu_custom_call.1} parent=35 // pred_region
          %s312 = smul.u32 2, %s22
          %p313 = scmp.lt.s32.totalorder %s312, 3
          %s314 = scalar_select %p313, %s312, 3
          %s315 = scalar_lea.vmem %s2, %s314
          %s316 = smul.u32 2, %s22
        $region48: #{tpu_custom_call.1} parent=35 // pred_fallthru
          _
      $region36: #{tpu_custom_call.1} parent=5 // pred_fallthru
        _
      %p317 = scmp.le.s32.totalorder 1, %s22
      %p318 = scmp.lt.s32.totalorder %s22, 3
      %p319 = pnand %p317, %p318
      %p320 = pneg %p319
      // Predicated region
      $region49: #{tpu_custom_call.1} parent=5 // pred_check
        _
      $region50: #{tpu_custom_call.1} parent=5 // pred_check_branch
        %322 = sbr.rel (%p319) target = $region52
      $region51: #{tpu_custom_call.1} parent=5 // pred_region
        %s323 = ssub.s32 %s22, 1
        %s324 = smul.u32 2, %s27
        %p325 = scmp.lt.s32.totalorder %s324, 3
        %s326 = scalar_select %p325, %s324, 3
        %s327 = smul.addr %s326, 4
        %s328 = scalar_lea.vmem %s0, %s327
        %p329 = pneg %p48
        %p330 = pneg %p45
        %s331 = smul.u32 2, %s27
        %p332 = scmp.lt.s32.totalorder %s331, 3
        %s333 = scalar_select %p332, %s331, 3
        %s334 = smul.addr %s333, 4
        %s335 = scalar_lea.vmem %s1, %s334
        %p336 = pneg %p74
        %p337 = pneg %p71
        %s338 = smul.u32 2, %s27
        %p339 = scmp.lt.s32.totalorder %s338, 3
        %s340 = scalar_select %p339, %s338, 3
        %s341 = scalar_lea.vmem %s2, %s340
        %p342 = pneg %p100
        %p343 = pneg %p97
        %p344 = pneg %p121
        %p345 = pneg %p118
        %p346 = pneg %p142
        %p347 = pneg %p139
        %p348 = pneg %p163
        %p349 = pneg %p160
        %p350 = pneg %p184
        %p351 = pneg %p181
        %p352 = pneg %p205
        %p353 = pneg %p202
        %p354 = pneg %p231
        %p355 = pneg %p228
        %s356 = sand.u32 %s218, 1
        %s357 = scalar_lea.sflag [#allocation3], %s356
        %s358 = sand.u32 %s218, 1
        %s359 = smul.addr %s358, 2
        %s360 = scalar_lea.vmem [#allocation2], %s359
        %p361 = pneg %p257
        %p362 = pneg %p254
        %s363 = sand.u32 %s244, 1
        %s364 = scalar_lea.sflag [#allocation5], %s363
        %s365 = sand.u32 %s244, 1
        %s366 = smul.addr %s365, 8
        %s367 = scalar_lea.vmem [#allocation4], %s366
        %s368 = smul.u32 2, %s27
        %p369 = scmp.lt.s32.totalorder %s368, 3
        %s370 = scalar_select %p369, %s368, 3
        %s371 = smul.addr %s370, 4
        %s372 = scalar_lea.vmem %s0, %s371
        %s373 = smul.u32 2, %s27
        %s374 = smul.u32 2, %s27
        %p375 = scmp.lt.s32.totalorder %s374, 3
        %s376 = scalar_select %p375, %s374, 3
        %s377 = smul.addr %s376, 4
        %s378 = scalar_lea.vmem %s1, %s377
        %s379 = smul.u32 2, %s27
        %s380 = smul.u32 2, %s27
        %p381 = scmp.lt.s32.totalorder %s380, 3
        %s382 = scalar_select %p381, %s380, 3
        %s383 = scalar_lea.vmem %s2, %s382
        %s384 = smul.u32 2, %s27
        %s385 = smul.u32 2, %s27
        %s386 = smul.u32 2, %s27
        %v388 = vld [vmem:[%s372] sm:$0xf]
        %v389 = vld [vmem:[%s372 + $0x4] sm:$0xf]
        %v390 = vld [vmem:[%s3] sm:$0xf]
        %v391 = vld [vmem:[%s3 + $0x4] sm:$0xf]
        %v392 = vld [vmem:[%s3 + $0x8] sm:$0xf]
        %v393 = vld [vmem:[%s3 + $0xc] sm:$0xf]
        %v394 = vld [vmem:[%s3 + $0x10] sm:$0xf]
        %v395 = vld [vmem:[%s3 + $0x14] sm:$0xf]
        %v396 = vld [vmem:[%s3 + $0x18] sm:$0xf]
        %v397 = vld [vmem:[%s3 + $0x1c] sm:$0xf]
        %v398 = vld [vmem:[%s3 + $0x20] sm:$0xf]
        %v399 = vld [vmem:[%s3 + $0x24] sm:$0xf]
        %v400 = vld [vmem:[%s3 + $0x28] sm:$0xf]
        %v401 = vld [vmem:[%s3 + $0x2c] sm:$0xf]
        %v402 = vld [vmem:[%s3 + $0x30] sm:$0xf]
        %v403 = vld [vmem:[%s3 + $0x34] sm:$0xf]
        %v404 = vld [vmem:[%s3 + $0x38] sm:$0xf]
        %v405 = vld [vmem:[%s3 + $0x3c] sm:$0xf]
        %v406 = vld [vmem:[%s4] sm:$0x1]
        %v408 = vlaneseq
        %v409 = vshrl.u32 %v408, 7
        %v410 = vsub.s32 0, %v409
        %v411 = vrot.slane %v406, %v410
        %v415 = vunpack.c.l.b16 %v388
        %v416 = vunpack.c.l.b16 %v389
        %v417 = vpack.c.b16 %v416, %v415
        %v435 = vunpack.c.l.b16 %v390
        %v436 = vunpack.c.l.b16 %v391
        %v437 = vunpack.c.l.b16 %v392
        %v438 = vunpack.c.l.b16 %v393
        %v439 = vunpack.c.l.b16 %v394
        %v440 = vunpack.c.l.b16 %v395
        %v441 = vunpack.c.l.b16 %v396
        %v442 = vunpack.c.l.b16 %v397
        %v443 = vunpack.c.l.b16 %v398
        %v444 = vunpack.c.l.b16 %v399
        %v445 = vunpack.c.l.b16 %v400
        %v446 = vunpack.c.l.b16 %v401
        %v447 = vunpack.c.l.b16 %v402
        %v448 = vunpack.c.l.b16 %v403
        %v449 = vunpack.c.l.b16 %v404
        %v450 = vunpack.c.l.b16 %v405
        %v451 = vpack.c.b16 %v436, %v435
        %v452 = vpack.c.b16 %v438, %v437
        %v453 = vpack.c.b16 %v440, %v439
        %v454 = vpack.c.b16 %v442, %v441
        %v455 = vpack.c.b16 %v444, %v443
        %v456 = vpack.c.b16 %v446, %v445
        %v457 = vpack.c.b16 %v448, %v447
        %v458 = vpack.c.b16 %v450, %v449
        %467 = vmatprep.subr.bf16.mxu0 0
        %468 = vmatpush1.bf16.msra.mxu0 %v451
        %469 = vmatprep.subr.bf16.mxu0 0
        %470 = vmatpush1.bf16.msra.mxu0 %v452
        %471 = vmatprep.subr.bf16.mxu0 0
        %472 = vmatpush1.bf16.msra.mxu0 %v453
        %473 = vmatprep.subr.bf16.mxu0 0
        %474 = vmatpush1.bf16.msra.mxu0 %v454
        %475 = vmatprep.subr.bf16.mxu0 0
        %476 = vmatpush1.bf16.msra.mxu0 %v455
        %477 = vmatprep.subr.bf16.mxu0 0
        %478 = vmatpush1.bf16.msra.mxu0 %v456
        %479 = vmatprep.subr.bf16.mxu0 0
        %480 = vmatpush1.bf16.msra.mxu0 %v457
        %481 = vmatprep.subr.bf16.mxu0 0
        %482 = vmatpush1.bf16.msra.mxu0 %v458
        %483 = vmatprep.subr.bf16.mxu0 0
        %484 = vmatpush1.bf16.msra.mxu0 0
        %485 = vmatprep.subr.bf16.mxu0 0
        %486 = vmatpush1.bf16.msra.mxu0 0
        %487 = vmatprep.subr.bf16.mxu0 0
        %488 = vmatpush1.bf16.msra.mxu0 0
        %489 = vmatprep.subr.bf16.mxu0 0
        %490 = vmatpush1.bf16.msra.mxu0 0
        %491 = vmatprep.subr.bf16.mxu0 0
        %492 = vmatpush1.bf16.msra.mxu0 0
        %493 = vmatprep.subr.bf16.mxu0 0
        %494 = vmatpush1.bf16.msra.mxu0 0
        %495 = vmatprep.subr.bf16.mxu0 0
        %496 = vmatpush1.bf16.msra.mxu0 0
        %497 = vmatprep.subr.bf16.mxu0 0
        %498 = vmatpush1.bf16.msra.mxu0 0
        %499 = vmatprep.mubr.bf16.mxu0 0
        %500 = vmatmul.mubr.bf16.gmra.mrb[0].mxu0 %v417
        %v501 = vpop.f32.mrb[0].mxu0
        %v502 = vadd.f32 %v411, %v501
        %v503 = vpop.f32.mrb[0].mxu0
        %v504 = vpop.f32.mrb[0].mxu0
        %v505 = vadd.f32 %v411, %v504
        %v506 = vpop.f32.mrb[0].mxu0
        %507 = vdwg.mxu0
        %v508 = vmax.f32 %v502, 0.0
        %v509 = vmax.f32 %v505, 0.0
        %v510 = vpack.c.bf16 %v508, %v508
        %v511 = vpack.c.bf16 %v509, %v509
        %512 = vst [vmem:[%s367] sm:$0xf] %v510
        %513 = vst [vmem:[%s367 + $0x4] sm:$0xf] %v511
        %v514 = vld [vmem:[%s6] sm:$0x1]
        %v515 = vpack.c.bf16 %v509, %v508
        %v516 = vld [vmem:[%s5] sm:$0xf]
        %v517 = vld [vmem:[%s5 + $0x4] sm:$0xf]
        %v518 = vld [vmem:[%s5 + $0x8] sm:$0xf]
        %v519 = vld [vmem:[%s5 + $0xc] sm:$0xf]
        %v520 = vld [vmem:[%s5 + $0x10] sm:$0xf]
        %v521 = vld [vmem:[%s5 + $0x14] sm:$0xf]
        %v522 = vld [vmem:[%s5 + $0x18] sm:$0xf]
        %v523 = vld [vmem:[%s5 + $0x1c] sm:$0xf]
        %v524 = vld [vmem:[%s5 + $0x20] sm:$0xf]
        %v525 = vld [vmem:[%s5 + $0x24] sm:$0xf]
        %v526 = vld [vmem:[%s5 + $0x28] sm:$0xf]
        %v527 = vld [vmem:[%s5 + $0x2c] sm:$0xf]
        %v528 = vld [vmem:[%s5 + $0x30] sm:$0xf]
        %v529 = vld [vmem:[%s5 + $0x34] sm:$0xf]
        %v530 = vld [vmem:[%s5 + $0x38] sm:$0xf]
        %v531 = vld [vmem:[%s5 + $0x3c] sm:$0xf]
        %v533 = vlaneseq
        %v534 = vshrl.u32 %v533, 7
        %v535 = vsub.s32 0, %v534
        %v536 = vrot.slane %v514, %v535
        %v554 = vunpack.c.l.b16 %v516
        %v555 = vunpack.c.l.b16 %v517
        %v556 = vunpack.c.l.b16 %v518
        %v557 = vunpack.c.l.b16 %v519
        %v558 = vunpack.c.l.b16 %v520
        %v559 = vunpack.c.l.b16 %v521
        %v560 = vunpack.c.l.b16 %v522
        %v561 = vunpack.c.l.b16 %v523
        %v562 = vunpack.c.l.b16 %v524
        %v563 = vunpack.c.l.b16 %v525
        %v564 = vunpack.c.l.b16 %v526
        %v565 = vunpack.c.l.b16 %v527
        %v566 = vunpack.c.l.b16 %v528
        %v567 = vunpack.c.l.b16 %v529
        %v568 = vunpack.c.l.b16 %v530
        %v569 = vunpack.c.l.b16 %v531
        %v570 = vpack.c.b16 %v555, %v554
        %v571 = vpack.c.b16 %v557, %v556
        %v572 = vpack.c.b16 %v559, %v558
        %v573 = vpack.c.b16 %v561, %v560
        %v574 = vpack.c.b16 %v563, %v562
        %v575 = vpack.c.b16 %v565, %v564
        %v576 = vpack.c.b16 %v567, %v566
        %v577 = vpack.c.b16 %v569, %v568
        %586 = vmatprep.subr.bf16.mxu0 0
        %587 = vmatpush1.bf16.msra.mxu0 %v570
        %588 = vmatprep.subr.bf16.mxu0 0
        %589 = vmatpush1.bf16.msra.mxu0 %v571
        %590 = vmatprep.subr.bf16.mxu0 0
        %591 = vmatpush1.bf16.msra.mxu0 %v572
        %592 = vmatprep.subr.bf16.mxu0 0
        %593 = vmatpush1.bf16.msra.mxu0 %v573
        %594 = vmatprep.subr.bf16.mxu0 0
        %595 = vmatpush1.bf16.msra.mxu0 %v574
        %596 = vmatprep.subr.bf16.mxu0 0
        %597 = vmatpush1.bf16.msra.mxu0 %v575
        %598 = vmatprep.subr.bf16.mxu0 0
        %599 = vmatpush1.bf16.msra.mxu0 %v576
        %600 = vmatprep.subr.bf16.mxu0 0
        %601 = vmatpush1.bf16.msra.mxu0 %v577
        %602 = vmatprep.subr.bf16.mxu0 0
        %603 = vmatpush1.bf16.msra.mxu0 0
        %604 = vmatprep.subr.bf16.mxu0 0
        %605 = vmatpush1.bf16.msra.mxu0 0
        %606 = vmatprep.subr.bf16.mxu0 0
        %607 = vmatpush1.bf16.msra.mxu0 0
        %608 = vmatprep.subr.bf16.mxu0 0
        %609 = vmatpush1.bf16.msra.mxu0 0
        %610 = vmatprep.subr.bf16.mxu0 0
        %611 = vmatpush1.bf16.msra.mxu0 0
        %612 = vmatprep.subr.bf16.mxu0 0
        %613 = vmatpush1.bf16.msra.mxu0 0
        %614 = vmatprep.subr.bf16.mxu0 0
        %615 = vmatpush1.bf16.msra.mxu0 0
        %616 = vmatprep.subr.bf16.mxu0 0
        %617 = vmatpush1.bf16.msra.mxu0 0
        %618 = vmatprep.mubr.bf16.mxu0 0
        %619 = vmatmul.mubr.bf16.gmra.mrb[0].mxu0 %v515
        %v620 = vpop.f32.mrb[0].mxu0
        %v621 = vadd.f32 %v536, %v620
        %v622 = vpop.f32.mrb[0].mxu0
        %v623 = vpop.f32.mrb[0].mxu0
        %v624 = vadd.f32 %v536, %v623
        %v625 = vpop.f32.mrb[0].mxu0
        %626 = vdwg.mxu0
        %v627 = vmax.f32 %v621, 0.0
        %v628 = vmax.f32 %v624, 0.0
        %v629 = vld [vmem:[%s378] sm:$0xf]
        %v630 = vld [vmem:[%s378 + $0x4] sm:$0xf]
        %v633 = vunpack.c.l.b16 %v629
        %v634 = vunpack.c.l.b16 %v630
        %v635 = vpack.c.b16 %v634, %v633
        %637 = vmatprep.subr.bf16.mxu0 0
        %638 = vmatpush1.bf16.msra.mxu0 %v570
        %639 = vmatprep.subr.bf16.mxu0 0
        %640 = vmatpush1.bf16.msra.mxu0 %v571
        %641 = vmatprep.subr.bf16.mxu0 0
        %642 = vmatpush1.bf16.msra.mxu0 %v572
        %643 = vmatprep.subr.bf16.mxu0 0
        %644 = vmatpush1.bf16.msra.mxu0 %v573
        %645 = vmatprep.subr.bf16.mxu0 0
        %646 = vmatpush1.bf16.msra.mxu0 %v574
        %647 = vmatprep.subr.bf16.mxu0 0
        %648 = vmatpush1.bf16.msra.mxu0 %v575
        %649 = vmatprep.subr.bf16.mxu0 0
        %650 = vmatpush1.bf16.msra.mxu0 %v576
        %651 = vmatprep.subr.bf16.mxu0 0
        %652 = vmatpush1.bf16.msra.mxu0 %v577
        %653 = vmatprep.subr.bf16.mxu0 0
        %654 = vmatpush1.bf16.msra.mxu0 0
        %655 = vmatprep.subr.bf16.mxu0 0
        %656 = vmatpush1.bf16.msra.mxu0 0
        %657 = vmatprep.subr.bf16.mxu0 0
        %658 = vmatpush1.bf16.msra.mxu0 0
        %659 = vmatprep.subr.bf16.mxu0 0
        %660 = vmatpush1.bf16.msra.mxu0 0
        %661 = vmatprep.subr.bf16.mxu0 0
        %662 = vmatpush1.bf16.msra.mxu0 0
        %663 = vmatprep.subr.bf16.mxu0 0
        %664 = vmatpush1.bf16.msra.mxu0 0
        %665 = vmatprep.subr.bf16.mxu0 0
        %666 = vmatpush1.bf16.msra.mxu0 0
        %667 = vmatprep.subr.bf16.mxu0 0
        %668 = vmatpush1.bf16.msra.mxu0 0
        %669 = vmatprep.mubr.bf16.mxu0 0
        %670 = vmatmul.mubr.bf16.gmra.mrb[0].mxu0 %v635
        %v671 = vpop.f32.mrb[0].mxu0
        %v672 = vadd.f32 %v536, %v671
        %v673 = vpop.f32.mrb[0].mxu0
        %v674 = vpop.f32.mrb[0].mxu0
        %v675 = vadd.f32 %v536, %v674
        %v676 = vpop.f32.mrb[0].mxu0
        %677 = vdwg.mxu0
        %v678 = vmax.f32 %v672, 0.0
        %v679 = vmax.f32 %v675, 0.0
        %v680 = vld [vmem:[%s7] sm:$0x1]
        %v682 = vlaneseq
        %v683 = vshrl.u32 %v682, 7
        %v684 = vsub.s32 0, %v683
        %v685 = vrot.slane %v680, %v684
        %v687 = vmul.f32 %v627, %v685
        %v688 = vmul.f32 %v628, %v685
        %vm689 = vcmask 523264
        %v690 = vsel %vm689, %v687, 0.0
        %691 = vadd.xlane.f32.xlu0 %v690
        %v692 = vpop.xlane.xlu0 %691
        %v693 = vsel %vm689, %v688, 0.0
        %694 = vadd.xlane.f32.xlu0 %v693
        %v695 = vpop.xlane.xlu0 %694
        %v696 = vmul.f32 %v678, %v685
        %v697 = vmul.f32 %v679, %v685
        %v698 = vsel %vm689, %v696, 0.0
        %699 = vadd.xlane.f32.xlu0 %v698
        %v700 = vpop.xlane.xlu0 %699
        %v701 = vsel %vm689, %v697, 0.0
        %702 = vadd.xlane.f32.xlu0 %v701
        %v703 = vpop.xlane.xlu0 %702
        %v706 = vlaneseq
        %v707 = vand.u32 %v706, 127
        %v708 = vlaneseq
        %v709 = vshrl.u32 %v708, 7
        %v710 = vsub.s32 %v707, %v709
        %v711 = vrot.slane %v692, %v710
        %v712 = vlaneseq
        %v713 = vshrl.u32 %v712, 7
        %v714 = vsub.s32 %v707, %v713
        %v715 = vrot.slane %v695, %v714
        %vm716 = vcmask 1041409
        %v717 = vsel %vm716, %v715, %v711
        %v721 = vadd.s32 %v707, 4294967288
        %v722 = vlaneseq
        %v723 = vshrl.u32 %v722, 7
        %v724 = vsub.s32 %v721, %v723
        %v725 = vrot.slane %v700, %v724
        %v726 = vlaneseq
        %v727 = vshrl.u32 %v726, 7
        %v728 = vsub.s32 %v721, %v727
        %v729 = vrot.slane %v703, %v728
        %v730 = vsel %vm716, %v729, %v725
        %vm732 = vcmask 64512
        %v733 = vsel %vm732, %v717, %v730
        %v734 = vld [vmem:[%s383] sm:$0x1]
        %v735 = vld [vmem:[%s383 + $0x1] sm:$0x1]
        %v738 = vcombine.low %v734, %v735
        %v740 = vunpack.c.l.s4 1966171168
        %v741 = vunpack.c.0.s8 %v740
        %v742 = vlaneseq
        %v743 = vshrl.u32 %v742, 7
        %v744 = vsub.s32 %v741, %v743
        %v745 = vrot.slane %v738, %v744
        %v747 = vunpack.c.l.s4 1966171168
        %v748 = vunpack.c.0.s8 %v747
        %v749 = vlaneseq
        %v750 = vshrl.u32 %v749, 7
        %v751 = vsub.s32 %v748, %v750
        %v752 = vrot.slane %v745, %v751
        %v754 = vadd.f32 %v733, %v752
        %vm755 = vcmask 123904
        %v756 = vsel %vm755, %v754, -inf
        %757 = vmax.xlane.f32.xlu0 %v756
        %v758 = vpop.xlane.xlu0 %757
        %v759 = vsub.f32 %v754, %v758
        %v760 = vmul.f32 %v759, 1.442695
        %v761 = vpow.pop %v760
        %v762 = vsel %vm755, %v761, 0.0
        %763 = vadd.xlane.f32.xlu0 %v762
        %v764 = vpop.xlane.xlu0 %763
        %v765 = vrcp.pop %v764
        %v766 = vmul.f32 %v761, %v765
        %v767 = vlaneseq
        %v768 = vshrl.u32 %v767, 7
        %v769 = vsub.s32 0, %v768
        %v770 = vrot.slane %v766, %v769
        %772 = vbcast.lane.b32.xlu0 %v770, 256
        %v773 = vpop.permute.xlu0 %772
        %v774 = vlaneseq
        %v775 = vshrl.u32 %v774, 7
        %v776 = vsub.s32 1, %v775
        %v777 = vrot.slane %v766, %v776
        %779 = vbcast.lane.b32.xlu0 %v777, 256
        %v780 = vpop.permute.xlu0 %779
        %v781 = vmul.f32 %v773, %v508
        %v782 = vmul.f32 %v780, %v509
        %v783 = vrot.slane %v781, 4
        %v784 = vadd.f32 %v781, %v783
        %v785 = vrot.slane %v784, 2
        %v786 = vadd.f32 %v784, %v785
        %v787 = vrot.slane %v786, 1
        %v788 = vadd.f32 %v786, %v787
        %v789 = vrot.slane %v782, 4
        %v790 = vadd.f32 %v782, %v789
        %v791 = vrot.slane %v790, 2
        %v792 = vadd.f32 %v790, %v791
        %v793 = vrot.slane %v792, 1
        %v794 = vadd.f32 %v792, %v793
        %s796 = sor.u32 256, 8
        %797 = vbcast.lane.b32.xlu0 %v770, %s796
        %v798 = vpop.permute.xlu0 %797
        %s800 = sor.u32 256, 8
        %801 = vbcast.lane.b32.xlu0 %v777, %s800
        %v802 = vpop.permute.xlu0 %801
        %v803 = vunpack.c.l.bf16 %v629
        %v804 = vunpack.c.l.bf16 %v630
        %v805 = vmul.f32 %v798, %v803
        %v806 = vmul.f32 %v802, %v804
        %v807 = vrot.slane %v805, 4
        %v808 = vadd.f32 %v805, %v807
        %v809 = vrot.slane %v808, 2
        %v810 = vadd.f32 %v808, %v809
        %v811 = vrot.slane %v810, 1
        %v812 = vadd.f32 %v810, %v811
        %v813 = vrot.slane %v806, 4
        %v814 = vadd.f32 %v806, %v813
        %v815 = vrot.slane %v814, 2
        %v816 = vadd.f32 %v814, %v815
        %v817 = vrot.slane %v816, 1
        %v818 = vadd.f32 %v816, %v817
        %v819 = vadd.f32 %v788, %v812
        %v820 = vadd.f32 %v794, %v818
        %821 = vst [vmem:[%s360] sm:$0x1] %v819
        %822 = vst [vmem:[%s360 + $0x1] sm:$0x1] %v820
        %s823 = sand.u32 %s218, 1
        %s824 = scalar_lea.sflag [#allocation3], %s823
        %s825 = sand.u32 %s218, 1
        %s826 = smul.addr %s825, 2
        %s827 = scalar_lea.vmem [#allocation2], %s826
        %s828 = sand.u32 %s244, 1
        %s829 = scalar_lea.sflag [#allocation5], %s828
        %s830 = sand.u32 %s244, 1
        %s831 = smul.addr %s830, 8
        %s832 = scalar_lea.vmem [#allocation4], %s831
        // Predicated region
        $region53: #{tpu_custom_call.1} parent=51 // pred_check
          %p833 = pneg %p228
        $region54: #{tpu_custom_call.1} parent=51 // pred_check_branch
          %835 = sbr.rel (%p833) target = $region56
        $region55: #{tpu_custom_call.1} parent=51 // pred_region
          %s836 = smul.u32 2, %s27
          %s838 = ssub.s32 32, 32
          %839 = vsyncadd %s824, %s838
          %s840 = smul.addr %s836, 16
          %s841 = scalar_lea.hbm %s8, %s840
          %s842 = sshll.u32 %s827, 4
          %s843 = int_to_ptr.vmem [resolvable:$true] %s842
          %848 = dma.vmem_to_hbm [thread:$0]  %s843, 32, %s841, %s824, 16, 16, 1
        $region56: #{tpu_custom_call.1} parent=51 // pred_fallthru
          _
        // Predicated region
        $region57: #{tpu_custom_call.1} parent=51 // pred_check
          %p849 = pneg %p254
        $region58: #{tpu_custom_call.1} parent=51 // pred_check_branch
          %851 = sbr.rel (%p849) target = $region60
        $region59: #{tpu_custom_call.1} parent=51 // pred_region
          %s852 = smul.u32 2, %s27
          %s854 = ssub.s32 128, 128
          %855 = vsyncadd %s829, %s854
          %s856 = smul.addr %s852, 64
          %s857 = scalar_lea.hbm %s9, %s856
          %s858 = sshll.u32 %s832, 4
          %s859 = int_to_ptr.vmem [resolvable:$true] %s858
          %864 = dma.vmem_to_hbm [thread:$0]  %s859, 128, %s857, %s829, 64, 64, 4
        $region60: #{tpu_custom_call.1} parent=51 // pred_fallthru
          _
      $region52: #{tpu_custom_call.1} parent=5 // pred_fallthru
        _
      %p865 = scmp.le.s32.totalorder 2, %s22
      // Predicated region
      $region61: #{tpu_custom_call.1} parent=5 // pred_check
        %p866 = pneg %p865
      $region62: #{tpu_custom_call.1} parent=5 // pred_check_branch
        %868 = sbr.rel (%p866) target = $region64
      $region63: #{tpu_custom_call.1} parent=5 // pred_region
        %s869 = ssub.s32 %s22, 2
        // Predicated region
        $region65: #{tpu_custom_call.1} parent=63 // pred_check
          %p870 = pneg %p234
        $region66: #{tpu_custom_call.1} parent=63 // pred_check_branch
          %872 = sbr.rel (%p870) target = $region68
        $region67: #{tpu_custom_call.1} parent=63 // pred_region
          %s873 = sand.u32 %s219, 1
          %s874 = scalar_lea.sflag [#allocation3], %s873
          %s875 = sand.u32 %s219, 1
          %s876 = smul.addr %s875, 2
          %s877 = scalar_lea.vmem [#allocation2], %s876
          %878 = dma.done %s874, 32
        $region68: #{tpu_custom_call.1} parent=63 // pred_fallthru
          _
        // Predicated region
        $region69: #{tpu_custom_call.1} parent=63 // pred_check
          %p879 = pneg %p260
        $region70: #{tpu_custom_call.1} parent=63 // pred_check_branch
          %881 = sbr.rel (%p879) target = $region72
        $region71: #{tpu_custom_call.1} parent=63 // pred_region
          %s882 = sand.u32 %s245, 1
          %s883 = scalar_lea.sflag [#allocation5], %s882
          %s884 = sand.u32 %s245, 1
          %s885 = smul.addr %s884, 8
          %s886 = scalar_lea.vmem [#allocation4], %s885
          %887 = dma.done %s883, 128
        $region72: #{tpu_custom_call.1} parent=63 // pred_fallthru
          _
      $region64: #{tpu_custom_call.1} parent=5 // pred_fallthru
        _
    $region6: #{tpu_custom_call.1} parent=1 // loop_footer
      %s26 = sadd.s32 1, %s22
    $region7: #{tpu_custom_call.1} parent=1 // loop_footer_branch
      %21 = sbr.rel target = $region3
    $region8: #{tpu_custom_call.1} parent=1 // loop_exit
      _
    %888 = vsyncpa [#allocation3], 1
    %s889 = scalar_lea.sflag [#allocation3], 1
    %890 = vsyncpa %s889, 1
    %891 = vsyncpa [#allocation5], 1
    %s892 = scalar_lea.sflag [#allocation5], 1
    %893 = vsyncpa %s892, 1

</llo_original>
